<compile_context>
chip_gen: v7x
topology: tpu7x:2x2x1
jax: 0.10.0
libtpu: 0.0.40
codegen_flags: <defaults>
</compile_context>

<pallas_src>
import math
import jax
import jax.numpy as jnp
from jax.experimental import pallas as pl
from jax.experimental.pallas import tpu as pltpu

IN_DIM = 28 * 28            # 784
H1, H2, H3, OUT = 512, 120, 84, 10
H2P, H3P, OUTP = 128, 128, 128   # lane-padded hidden / output dims

DROP_P = 0.3
_KEEP_SCALE = 1.0 / (1.0 - DROP_P)
_DROP_THRESH = int(round(DROP_P * (2 ** 32)))   # uint32 threshold: bits < thresh -> drop

TB_MAX = 512                # batch tile cap (headroom for v7x 64 MiB VMEM)


def _round_up(n, m):
    return ((n + m - 1) // m) * m


def _mlp_kernel(x_ref, bits_ref,
                w1_ref, b1_ref, w2_ref, b2_ref,
                w3_ref, b3_ref, w4_ref, b4_ref,
                o_ref):
    # fc1 + relu (bf16 x bf16 -> f32 accumulate on MXU)
    h1 = jnp.dot(x_ref[...], w1_ref[...],
                 preferred_element_type=jnp.float32) + b1_ref[...]
    h1 = jnp.maximum(h1, 0.0)

    # dropout(p=0.3), training mode. The 1/(1-p) scale is pre-folded into W2,
    # so only the Bernoulli mask/select happens here.
    keep = bits_ref[...] >= jnp.uint32(_DROP_THRESH)
    h1 = jnp.where(keep, h1, 0.0).astype(jnp.bfloat16)

    # fc2 + relu  (W2 already scaled by 1/(1-p) and lane-padded to 128 cols)
    h2 = jnp.maximum(
        jnp.dot(h1, w2_ref[...], preferred_element_type=jnp.float32) + b2_ref[...],
        0.0).astype(jnp.bfloat16)

    # fc3 + relu
    h3 = jnp.maximum(
        jnp.dot(h2, w3_ref[...], preferred_element_type=jnp.float32) + b3_ref[...],
        0.0).astype(jnp.bfloat16)

    # fc4 (logits, no activation); padded output columns are zero.
    o_ref[...] = jnp.dot(h3, w4_ref[...],
                         preferred_element_type=jnp.float32) + b4_ref[...]


def prepare_params(params):
    """One-time prep: fold dropout scale into W2, zero-pad to lane-dense dims,
    cast weights to bf16 (biases stay f32 for the f32-accumulated bias add)."""
    w1, b1, w2, b2, w3, b3, w4, b4 = params

    w2 = w2 * _KEEP_SCALE                                   # fold 1/(1-p)
    w2 = jnp.pad(w2, ((0, 0), (0, H2P - H2)))
    b2 = jnp.pad(b2, ((0, 0), (0, H2P - H2)))
    w3 = jnp.pad(w3, ((0, H2P - H2), (0, H3P - H3)))
    b3 = jnp.pad(b3, ((0, 0), (0, H3P - H3)))
    w4 = jnp.pad(w4, ((0, H3P - H3), (0, OUTP - OUT)))
    b4 = jnp.pad(b4, ((0, 0), (0, OUTP - OUT)))

    w1, w2, w3, w4 = (w.astype(jnp.bfloat16) for w in (w1, w2, w3, w4))
    b1, b2, b3, b4 = (b.astype(jnp.float32) for b in (b1, b2, b3, b4))
    return (w1, b1, w2, b2, w3, b3, w4, b4)


def net2_forward(x, prepared_params, dropout_key):
    """x: (B, 1, 28, 28) or anything reshapable to (B, 784). Returns (B, 10) f32."""
    w1, b1, w2, b2, w3, b3, w4, b4 = prepared_params

    x2d = x.reshape(-1, IN_DIM)
    b = x2d.shape[0]

    # batch padding: multiples of 16 (bf16 sublane packing); tile cap TB_MAX.
    b16 = _round_up(max(b, 16), 16)
    tb = min(TB_MAX, b16)
    b_pad = _round_up(b16, tb)
    if b_pad != b:
        x2d = jnp.pad(x2d, ((0, b_pad - b), (0, 0)))
    x2d = x2d.astype(jnp.bfloat16)

    # dropout random bits, generated once outside the kernel (TPU-PRNG-free);
    # each batch tile sees its own slice -> independent masks per tile.
    bits = jax.random.bits(dropout_key, (b_pad, H1), dtype=jnp.uint32)

    n_tiles = b_pad // tb

    def _tiled(shape):
        return pl.BlockSpec(shape, lambda i: (i, 0))

    def _resident(shape):
        return pl.BlockSpec(shape, lambda i: (0, 0))

    out = pl.pallas_call(
        _mlp_kernel,
        out_shape=jax.ShapeDtypeStruct((b_pad, OUTP), jnp.float32),
        grid_spec=pltpu.PrefetchScalarGridSpec(
            num_scalar_prefetch=0,
            grid=(n_tiles,),
            in_specs=[
                _tiled((tb, IN_DIM)),          # x tile
                _tiled((tb, H1)),              # dropout bits tile
                _resident((IN_DIM, H1)), _resident((1, H1)),
                _resident((H1, H2P)),    _resident((1, H2P)),
                _resident((H2P, H3P)),   _resident((1, H3P)),
                _resident((H3P, OUTP)),  _resident((1, OUTP)),
            ],
            out_specs=_tiled((tb, OUTP)),
        ),
        compiler_params=pltpu.CompilerParams(
            dimension_semantics=("parallel",),          # megacore on v7x
            vmem_limit_bytes=32 * 1024 * 1024,
        ),
    )(x2d, bits, w1, b1, w2, b2, w3, b3, w4, b4)

    return out[:b, :OUT]


def init_params(key):
    """torch nn.Linear-style init: weight, bias ~ U(-1/sqrt(fan_in), 1/sqrt(fan_in)).
    Weights stored transposed as (in, out) so the kernel computes x @ W + b."""
    dims = [(IN_DIM, H1), (H1, H2), (H2, H3), (H3, OUT)]
    params = []
    for fan_in, fan_out in dims:
        key, kw, kb = jax.random.split(key, 3)
        bound = 1.0 / math.sqrt(fan_in)
        w = jax.random.uniform(kw, (fan_in, fan_out), jnp.float32, -bound, bound)
        bb = jax.random.uniform(kb, (1, fan_out), jnp.float32, -bound, bound)
        params += [w, bb]
    return tuple(params)


if __name__ == "__main__":
    key = jax.random.PRNGKey(0)
    key, kx, kd = jax.random.split(key, 3)

    params = prepare_params(init_params(key))
    # small MNIST-like batch: (B=2, C=1, H=28, W=28), NCHW as in PyTorch
    x = jax.random.normal(kx, (2, 1, 28, 28), dtype=jnp.float32)

    y = net2_forward(x, params, dropout_key=kd)
    y = jax.block_until_ready(y)

    assert y.shape == (2, OUT) and y.dtype == jnp.float32
    assert bool(jnp.all(jnp.isfinite(y)))
    print("KERNEL_OK")
</pallas_src>

<mosaic_0001>
module attributes {stable_mosaic.version = 11 : i64} {
  func.func @_mlp_kernel(%arg0: i32, %arg1: memref<16x784xbf16, #tpu.memory_space<vmem>>, %arg2: memref<16x512xi32, #tpu.memory_space<vmem>>, %arg3: memref<784x512xbf16, #tpu.memory_space<vmem>>, %arg4: memref<1x512xf32, #tpu.memory_space<vmem>>, %arg5: memref<512x128xbf16, #tpu.memory_space<vmem>>, %arg6: memref<1x128xf32, #tpu.memory_space<vmem>>, %arg7: memref<128x128xbf16, #tpu.memory_space<vmem>>, %arg8: memref<1x128xf32, #tpu.memory_space<vmem>>, %arg9: memref<128x128xbf16, #tpu.memory_space<vmem>>, %arg10: memref<1x128xf32, #tpu.memory_space<vmem>>, %arg11: memref<16x128xf32, #tpu.memory_space<vmem>>) attributes {dimension_semantics = [#tpu.dimension_semantics<parallel>], iteration_bounds = array<i64: 1>, scalar_prefetch = 0 : i64, scratch_operands = 0 : i64, tpu.core_type = #tpu.core_type<tc>, window_params = [{transform_indices = @transform_0, window_bounds = array<i64: 16, 784>}, {transform_indices = @transform_1, window_bounds = array<i64: 16, 512>}, {pipeline_mode = #tpu.pipeline_mode<synchronous>, transform_indices = @transform_2, window_bounds = array<i64: 784, 512>}, {pipeline_mode = #tpu.pipeline_mode<synchronous>, transform_indices = @transform_3, window_bounds = array<i64: 1, 512>}, {pipeline_mode = #tpu.pipeline_mode<synchronous>, transform_indices = @transform_4, window_bounds = array<i64: 512, 128>}, {pipeline_mode = #tpu.pipeline_mode<synchronous>, transform_indices = @transform_5, window_bounds = array<i64: 1, 128>}, {pipeline_mode = #tpu.pipeline_mode<synchronous>, transform_indices = @transform_6, window_bounds = array<i64: 128, 128>}, {pipeline_mode = #tpu.pipeline_mode<synchronous>, transform_indices = @transform_7, window_bounds = array<i64: 1, 128>}, {pipeline_mode = #tpu.pipeline_mode<synchronous>, transform_indices = @transform_8, window_bounds = array<i64: 128, 128>}, {pipeline_mode = #tpu.pipeline_mode<synchronous>, transform_indices = @transform_9, window_bounds = array<i64: 1, 128>}, {transform_indices = @transform_10, window_bounds = array<i64: 16, 128>}]} {
    %c0 = arith.constant 0 : index
    %c0_0 = arith.constant 0 : index
    %0 = vector.load %arg1[%c0, %c0_0] : memref<16x784xbf16, #tpu.memory_space<vmem>>, vector<16x784xbf16>
    %c0_1 = arith.constant 0 : index
    %c0_2 = arith.constant 0 : index
    %1 = vector.load %arg3[%c0_1, %c0_2] : memref<784x512xbf16, #tpu.memory_space<vmem>>, vector<784x512xbf16>
    %cst = arith.constant dense<0.000000e+00> : vector<16x512xf32>
    %2 = tpu.matmul %0, %1, %cst {dimension_numbers = #tpu.dot_dimension_numbers<[1], [0], [0], [1], [0, 0, 1, 1], [], []>} : vector<16x784xbf16>, vector<784x512xbf16>, vector<16x512xf32> -> vector<16x512xf32>
    %c0_3 = arith.constant 0 : index
    %c0_4 = arith.constant 0 : index
    %3 = vector.load %arg4[%c0_3, %c0_4] : memref<1x512xf32, #tpu.memory_space<vmem>>, vector<1x512xf32>
    %4 = vector.broadcast %3 : vector<1x512xf32> to vector<16x512xf32>
    %5 = arith.addf %2, %4 : vector<16x512xf32>
    %cst_5 = arith.constant 0.000000e+00 : f32
    %6 = vector.broadcast %cst_5 : f32 to vector<16x512xf32>
    %7 = arith.maximumf %5, %6 : vector<16x512xf32>
    %c0_6 = arith.constant 0 : index
    %c0_7 = arith.constant 0 : index
    %8 = vector.load %arg2[%c0_6, %c0_7] : memref<16x512xi32, #tpu.memory_space<vmem>>, vector<16x512xi32>
    %c1288490189_i32 = arith.constant 1288490189 : i32
    %9 = vector.broadcast %c1288490189_i32 : i32 to vector<16x512xi32>
    %10 = arith.cmpi uge, %8, %9 : vector<16x512xi32>
    %cst_8 = arith.constant 0.000000e+00 : f32
    %11 = vector.broadcast %cst_8 : f32 to vector<16x512xf32>
    %12 = arith.select %10, %7, %11 : vector<16x512xi1>, vector<16x512xf32>
    %13 = arith.truncf %12 : vector<16x512xf32> to vector<16x512xbf16>
    %c0_9 = arith.constant 0 : index
    %c0_10 = arith.constant 0 : index
    %14 = vector.load %arg5[%c0_9, %c0_10] : memref<512x128xbf16, #tpu.memory_space<vmem>>, vector<512x128xbf16>
    %cst_11 = arith.constant dense<0.000000e+00> : vector<16x128xf32>
    %15 = tpu.matmul %13, %14, %cst_11 {dimension_numbers = #tpu.dot_dimension_numbers<[1], [0], [0], [1], [0, 0, 1, 1], [], []>} : vector<16x512xbf16>, vector<512x128xbf16>, vector<16x128xf32> -> vector<16x128xf32>
    %c0_12 = arith.constant 0 : index
    %c0_13 = arith.constant 0 : index
    %16 = vector.load %arg6[%c0_12, %c0_13] : memref<1x128xf32, #tpu.memory_space<vmem>>, vector<1x128xf32>
    %17 = vector.broadcast %16 : vector<1x128xf32> to vector<16x128xf32>
    %18 = arith.addf %15, %17 : vector<16x128xf32>
    %cst_14 = arith.constant 0.000000e+00 : f32
    %19 = vector.broadcast %cst_14 : f32 to vector<16x128xf32>
    %20 = arith.maximumf %18, %19 : vector<16x128xf32>
    %21 = arith.truncf %20 : vector<16x128xf32> to vector<16x128xbf16>
    %c0_15 = arith.constant 0 : index
    %c0_16 = arith.constant 0 : index
    %22 = vector.load %arg7[%c0_15, %c0_16] : memref<128x128xbf16, #tpu.memory_space<vmem>>, vector<128x128xbf16>
    %cst_17 = arith.constant dense<0.000000e+00> : vector<16x128xf32>
    %23 = tpu.matmul %21, %22, %cst_17 {dimension_numbers = #tpu.dot_dimension_numbers<[1], [0], [0], [1], [0, 0, 1, 1], [], []>} : vector<16x128xbf16>, vector<128x128xbf16>, vector<16x128xf32> -> vector<16x128xf32>
    %c0_18 = arith.constant 0 : index
    %c0_19 = arith.constant 0 : index
    %24 = vector.load %arg8[%c0_18, %c0_19] : memref<1x128xf32, #tpu.memory_space<vmem>>, vector<1x128xf32>
    %25 = vector.broadcast %24 : vector<1x128xf32> to vector<16x128xf32>
    %26 = arith.addf %23, %25 : vector<16x128xf32>
    %cst_20 = arith.constant 0.000000e+00 : f32
    %27 = vector.broadcast %cst_20 : f32 to vector<16x128xf32>
    %28 = arith.maximumf %26, %27 : vector<16x128xf32>
    %29 = arith.truncf %28 : vector<16x128xf32> to vector<16x128xbf16>
    %c0_21 = arith.constant 0 : index
    %c0_22 = arith.constant 0 : index
    %30 = vector.load %arg9[%c0_21, %c0_22] : memref<128x128xbf16, #tpu.memory_space<vmem>>, vector<128x128xbf16>
    %cst_23 = arith.constant dense<0.000000e+00> : vector<16x128xf32>
    %31 = tpu.matmul %29, %30, %cst_23 {dimension_numbers = #tpu.dot_dimension_numbers<[1], [0], [0], [1], [0, 0, 1, 1], [], []>} : vector<16x128xbf16>, vector<128x128xbf16>, vector<16x128xf32> -> vector<16x128xf32>
    %c0_24 = arith.constant 0 : index
    %c0_25 = arith.constant 0 : index
    %32 = vector.load %arg10[%c0_24, %c0_25] : memref<1x128xf32, #tpu.memory_space<vmem>>, vector<1x128xf32>
    %33 = vector.broadcast %32 : vector<1x128xf32> to vector<16x128xf32>
    %34 = arith.addf %31, %33 : vector<16x128xf32>
    %c0_26 = arith.constant 0 : index
    %c0_27 = arith.constant 0 : index
    %35 = vector.load %arg11[%c0_26, %c0_27] : memref<16x128xf32, #tpu.memory_space<vmem>>, vector<16x128xf32>
    tpu.vector_store %arg11[%c0_26, %c0_27], %34 {strides = array<i32>} : memref<16x128xf32, #tpu.memory_space<vmem>>, vector<16x128xf32>,
    return
  }
  func.func @transform_0(%arg0: i32) -> (i32, i32) {
    %c0_i32 = arith.constant 0 : i32
    %c0_i32_0 = arith.constant 0 : i32
    return %arg0, %c0_i32 : i32, i32
  }
  func.func @transform_1(%arg0: i32) -> (i32, i32) {
    %c0_i32 = arith.constant 0 : i32
    %c0_i32_0 = arith.constant 0 : i32
    return %arg0, %c0_i32 : i32, i32
  }
  func.func @transform_2(%arg0: i32) -> (i32, i32) {
    %c0_i32 = arith.constant 0 : i32
    %c0_i32_0 = arith.constant 0 : i32
    %c0_i32_1 = arith.constant 0 : i32
    return %c0_i32, %c0_i32_0 : i32, i32
  }
  func.func @transform_3(%arg0: i32) -> (i32, i32) {
    %c0_i32 = arith.constant 0 : i32
    %c0_i32_0 = arith.constant 0 : i32
    %c0_i32_1 = arith.constant 0 : i32
    return %c0_i32, %c0_i32_0 : i32, i32
  }
  func.func @transform_4(%arg0: i32) -> (i32, i32) {
    %c0_i32 = arith.constant 0 : i32
    %c0_i32_0 = arith.constant 0 : i32
    %c0_i32_1 = arith.constant 0 : i32
    return %c0_i32, %c0_i32_0 : i32, i32
  }
  func.func @transform_5(%arg0: i32) -> (i32, i32) {
    %c0_i32 = arith.constant 0 : i32
    %c0_i32_0 = arith.constant 0 : i32
    %c0_i32_1 = arith.constant 0 : i32
    return %c0_i32, %c0_i32_0 : i32, i32
  }
  func.func @transform_6(%arg0: i32) -> (i32, i32) {
    %c0_i32 = arith.constant 0 : i32
    %c0_i32_0 = arith.constant 0 : i32
    %c0_i32_1 = arith.constant 0 : i32
    return %c0_i32, %c0_i32_0 : i32, i32
  }
  func.func @transform_7(%arg0: i32) -> (i32, i32) {
    %c0_i32 = arith.constant 0 : i32
    %c0_i32_0 = arith.constant 0 : i32
    %c0_i32_1 = arith.constant 0 : i32
    return %c0_i32, %c0_i32_0 : i32, i32
  }
  func.func @transform_8(%arg0: i32) -> (i32, i32) {
    %c0_i32 = arith.constant 0 : i32
    %c0_i32_0 = arith.constant 0 : i32
    %c0_i32_1 = arith.constant 0 : i32
    return %c0_i32, %c0_i32_0 : i32, i32
  }
  func.func @transform_9(%arg0: i32) -> (i32, i32) {
    %c0_i32 = arith.constant 0 : i32
    %c0_i32_0 = arith.constant 0 : i32
    %c0_i32_1 = arith.constant 0 : i32
    return %c0_i32, %c0_i32_0 : i32, i32
  }
  func.func @transform_10(%arg0: i32) -> (i32, i32) {
    %c0_i32 = arith.constant 0 : i32
    %c0_i32_0 = arith.constant 0 : i32
    return %arg0, %c0_i32 : i32, i32
  }
}

</mosaic_0001>

<llo_original>
// kernel: tpu_custom_call.1
$region0: #{tpu_custom_call.1}
  #allocation0 [shape = 'u32[]', space=smem, size = 0x4, offset = 0x4, fixed_abs, tag = 'smem constant byte address 0x4 - core index']
  #allocation1 [shape = 'u32[144,128]{1,0:T(1,128)}', space=vmem, size = 0x12000, scoped, tag = 'internal scratch']
  %s0 = inlined_call_operand.hbm [shape: bf16[16,784], index: 0, kind: input, shape index: {}]
  %s1 = inlined_call_operand.hbm [shape: u32[16,512], index: 1, kind: input, shape index: {}]
  %s2 = inlined_call_operand.hbm [shape: bf16[784,512], index: 2, kind: input, shape index: {}]
  %s3 = inlined_call_operand.vmem [shape: f32[1,512], index: 3, kind: input, shape index: {}]
  %s4 = inlined_call_operand.hbm [shape: bf16[512,128], index: 4, kind: input, shape index: {}]
  %s5 = inlined_call_operand.vmem [shape: f32[1,128], index: 5, kind: input, shape index: {}]
  %s6 = inlined_call_operand.hbm [shape: bf16[128,128], index: 6, kind: input, shape index: {}]
  %s7 = inlined_call_operand.vmem [shape: f32[1,128], index: 7, kind: input, shape index: {}]
  %s8 = inlined_call_operand.hbm [shape: bf16[128,128], index: 8, kind: input, shape index: {}]
  %s9 = inlined_call_operand.vmem [shape: f32[1,128], index: 9, kind: input, shape index: {}]
  %s10 = inlined_call_operand.hbm [shape: f32[16,128], index: 10, kind: output, shape index: {}]
  %s11 = sld [smem:[#allocation0]]
  $region74: #{tpu_custom_call.1} parent=0
    _
  %s13 = ssub.s32 1, %s11
  %s14 = scalar_select 0, %s13, %s11
  $region1: #{tpu_custom_call.1} parent=0
    #allocation2 [shape = 'u8[28672]{0}', space=vmem, size = 0x7000, scoped, tag = 'input window, operand 0, single buffered']
    #allocation3 [shape = 's32[1]{0}', space=sflag, size = 0x4, scoped, tag = 'scoped memory for tpu_custom_call.1']
    #allocation4 [shape = 's32[1]{0}', space=sflag, size = 0x4, scoped, tag = 'scoped memory for tpu_custom_call.1']
    #allocation5 [shape = 'u8[32768]{0}', space=vmem, size = 0x8000, scoped, tag = 'input window, operand 1, single buffered']
    #allocation6 [shape = 's32[1]{0}', space=sflag, size = 0x4, scoped, tag = 'scoped memory for tpu_custom_call.1']
    #allocation7 [shape = 'u8[802816]{0}', space=vmem, size = 0xc4000, scoped, tag = 'input window, operand 2, single buffered']
    #allocation8 [shape = 'u8[131072]{0}', space=vmem, size = 0x20000, scoped, tag = 'input window, operand 4, single buffered']
    #allocation9 [shape = 's32[1]{0}', space=sflag, size = 0x4, scoped, tag = 'scoped memory for tpu_custom_call.1']
    #allocation10 [shape = 'u8[32768]{0}', space=vmem, size = 0x8000, scoped, tag = 'input window, operand 6, single buffered']
    #allocation11 [shape = 'u8[32768]{0}', space=vmem, size = 0x8000, scoped, tag = 'input window, operand 8, single buffered']
    #allocation12 [shape = 's32[1]{0}', space=sflag, size = 0x4, scoped, tag = 'scoped memory for tpu_custom_call.1']
    #allocation13 [shape = 'u8[8192]{0}', space=vmem, size = 0x2000, scoped, tag = 'output window, operand 0, single buffered']
    %15 = vsyncpa [#allocation3], 0
    %16 = vsyncpa [#allocation6], 0
    %17 = vsyncpa [#allocation9], 0
    %18 = vsyncpa [#allocation12], 0
    %19 = vsyncpa [#allocation4], 0
    // Predicated region
    $region2: #{tpu_custom_call.1} parent=1 // pred_check
      _
    $region3: #{tpu_custom_call.1} parent=1 // pred_check_branch
      %21 = sbr.rel (0) target = $region5
    $region4: #{tpu_custom_call.1} parent=1 // pred_region
      %s23 = ssub.s32 896, 896
      %24 = vsyncadd [#allocation3], %s23
      %s25 = sshll.u32 [#allocation2], 4
      %s26 = int_to_ptr.vmem [resolvable:$true] %s25
      %31 = dma.hbm_to_vmem [thread:$0]  %s0, 896, %s26, [#allocation3], 448, 448, 28
    $region5: #{tpu_custom_call.1} parent=1 // pred_fallthru
      _
    // Predicated region
    $region6: #{tpu_custom_call.1} parent=1 // pred_check
      _
    $region7: #{tpu_custom_call.1} parent=1 // pred_check_branch
      %33 = sbr.rel (0) target = $region9
    $region8: #{tpu_custom_call.1} parent=1 // pred_region
      %s35 = ssub.s32 1024, 1024
      %36 = vsyncadd [#allocation6], %s35
      %s37 = sshll.u32 [#allocation5], 4
      %s38 = int_to_ptr.vmem [resolvable:$true] %s37
      %43 = dma.hbm_to_vmem [thread:$0]  %s1, 1024, %s38, [#allocation6], 512, 512, 32
    $region9: #{tpu_custom_call.1} parent=1 // pred_fallthru
      _
    // Predicated region
    $region10: #{tpu_custom_call.1} parent=1 // pred_check
      _
    $region11: #{tpu_custom_call.1} parent=1 // pred_check_branch
      %45 = sbr.rel (0) target = $region13
    $region12: #{tpu_custom_call.1} parent=1 // pred_region
      %s47 = ssub.s32 25088, 25088
      %48 = vsyncadd [#allocation6], %s47
      %s49 = sshll.u32 [#allocation7], 4
      %s50 = int_to_ptr.vmem [resolvable:$true] %s49
      %55 = dma.hbm_to_vmem [thread:$0]  %s2, 25088, %s50, [#allocation6], 256, 256, 16
    $region13: #{tpu_custom_call.1} parent=1 // pred_fallthru
      _
    // Predicated region
    $region14: #{tpu_custom_call.1} parent=1 // pred_check
      _
    $region15: #{tpu_custom_call.1} parent=1 // pred_check_branch
      %57 = sbr.rel (0) target = $region17
    $region16: #{tpu_custom_call.1} parent=1 // pred_region
      _
    $region17: #{tpu_custom_call.1} parent=1 // pred_fallthru
      _
    // Predicated region
    $region18: #{tpu_custom_call.1} parent=1 // pred_check
      _
    $region19: #{tpu_custom_call.1} parent=1 // pred_check_branch
      %59 = sbr.rel (0) target = $region21
    $region20: #{tpu_custom_call.1} parent=1 // pred_region
      %s61 = ssub.s32 4096, 4096
      %62 = vsyncadd [#allocation9], %s61
      %s63 = sshll.u32 [#allocation8], 4
      %s64 = int_to_ptr.vmem [resolvable:$true] %s63
      %69 = dma.hbm_to_vmem [thread:$0]  %s4, 4096, %s64, [#allocation9], 64, 64, 4
    $region21: #{tpu_custom_call.1} parent=1 // pred_fallthru
      _
    // Predicated region
    $region22: #{tpu_custom_call.1} parent=1 // pred_check
      _
    $region23: #{tpu_custom_call.1} parent=1 // pred_check_branch
      %71 = sbr.rel (0) target = $region25
    $region24: #{tpu_custom_call.1} parent=1 // pred_region
      _
    $region25: #{tpu_custom_call.1} parent=1 // pred_fallthru
      _
    // Predicated region
    $region26: #{tpu_custom_call.1} parent=1 // pred_check
      _
    $region27: #{tpu_custom_call.1} parent=1 // pred_check_branch
      %73 = sbr.rel (0) target = $region29
    $region28: #{tpu_custom_call.1} parent=1 // pred_region
      %s75 = ssub.s32 1024, 1024
      %76 = vsyncadd [#allocation9], %s75
      %s77 = sshll.u32 [#allocation10], 4
      %s78 = int_to_ptr.vmem [resolvable:$true] %s77
      %83 = dma.hbm_to_vmem [thread:$0]  %s6, 1024, %s78, [#allocation9], 64, 64, 4
    $region29: #{tpu_custom_call.1} parent=1 // pred_fallthru
      _
    // Predicated region
    $region30: #{tpu_custom_call.1} parent=1 // pred_check
      _
    $region31: #{tpu_custom_call.1} parent=1 // pred_check_branch
      %85 = sbr.rel (0) target = $region33
    $region32: #{tpu_custom_call.1} parent=1 // pred_region
      _
    $region33: #{tpu_custom_call.1} parent=1 // pred_fallthru
      _
    // Predicated region
    $region34: #{tpu_custom_call.1} parent=1 // pred_check
      _
    $region35: #{tpu_custom_call.1} parent=1 // pred_check_branch
      %87 = sbr.rel (0) target = $region37
    $region36: #{tpu_custom_call.1} parent=1 // pred_region
      %s89 = ssub.s32 1024, 1024
      %90 = vsyncadd [#allocation12], %s89
      %s91 = sshll.u32 [#allocation11], 4
      %s92 = int_to_ptr.vmem [resolvable:$true] %s91
      %97 = dma.hbm_to_vmem [thread:$0]  %s8, 1024, %s92, [#allocation12], 64, 64, 4
    $region37: #{tpu_custom_call.1} parent=1 // pred_fallthru
      _
    // Predicated region
    $region38: #{tpu_custom_call.1} parent=1 // pred_check
      _
    $region39: #{tpu_custom_call.1} parent=1 // pred_check_branch
      %99 = sbr.rel (0) target = $region41
    $region40: #{tpu_custom_call.1} parent=1 // pred_region
      _
    $region41: #{tpu_custom_call.1} parent=1 // pred_fallthru
      _
    // Predicated region
    $region42: #{tpu_custom_call.1} parent=1 // pred_check
      _
    $region43: #{tpu_custom_call.1} parent=1 // pred_check_branch
      %101 = sbr.rel (0) target = $region45
    $region44: #{tpu_custom_call.1} parent=1 // pred_region
      %102 = dma.done [#allocation3], 896
    $region45: #{tpu_custom_call.1} parent=1 // pred_fallthru
      _
    // Predicated region
    $region46: #{tpu_custom_call.1} parent=1 // pred_check
      _
    $region47: #{tpu_custom_call.1} parent=1 // pred_check_branch
      %104 = sbr.rel (0) target = $region49
    $region48: #{tpu_custom_call.1} parent=1 // pred_region
      %105 = dma.done [#allocation6], 1024
    $region49: #{tpu_custom_call.1} parent=1 // pred_fallthru
      _
    // Predicated region
    $region50: #{tpu_custom_call.1} parent=1 // pred_check
      _
    $region51: #{tpu_custom_call.1} parent=1 // pred_check_branch
      %107 = sbr.rel (0) target = $region53
    $region52: #{tpu_custom_call.1} parent=1 // pred_region
      %108 = dma.done [#allocation6], 25088
    $region53: #{tpu_custom_call.1} parent=1 // pred_fallthru
      _
    // Predicated region
    $region54: #{tpu_custom_call.1} parent=1 // pred_check
      _
    $region55: #{tpu_custom_call.1} parent=1 // pred_check_branch
      %110 = sbr.rel (0) target = $region57
    $region56: #{tpu_custom_call.1} parent=1 // pred_region
      %111 = dma.done [#allocation9], 4096
    $region57: #{tpu_custom_call.1} parent=1 // pred_fallthru
      _
    // Predicated region
    $region58: #{tpu_custom_call.1} parent=1 // pred_check
      _
    $region59: #{tpu_custom_call.1} parent=1 // pred_check_branch
      %113 = sbr.rel (0) target = $region61
    $region60: #{tpu_custom_call.1} parent=1 // pred_region
      %114 = dma.done [#allocation9], 1024
    $region61: #{tpu_custom_call.1} parent=1 // pred_fallthru
      _
    // Predicated region
    $region62: #{tpu_custom_call.1} parent=1 // pred_check
      _
    $region63: #{tpu_custom_call.1} parent=1 // pred_check_branch
      %116 = sbr.rel (0) target = $region65
    $region64: #{tpu_custom_call.1} parent=1 // pred_region
      %117 = dma.done [#allocation12], 1024
    $region65: #{tpu_custom_call.1} parent=1 // pred_fallthru
      _
    %v119 = vld [vmem:[#allocation2] sm:$0xff]
    %v120 = vld [vmem:[#allocation2 + $0x8] sm:$0xff]
    %v121 = vld [vmem:[#allocation2 + $0x10] sm:$0xff]
    %v122 = vld [vmem:[#allocation2 + $0x18] sm:$0xf]
    %v123 = vld [vmem:[#allocation2 + $0x1c] sm:$0xff]
    %v124 = vld [vmem:[#allocation2 + $0x24] sm:$0xff]
    %v125 = vld [vmem:[#allocation2 + $0x2c] sm:$0xff]
    %v126 = vld [vmem:[#allocation2 + $0x34] sm:$0xf]
    %v127 = vld [vmem:[#allocation7] sm:$0xff]
    %v128 = vld [vmem:[#allocation7 + $0x8] sm:$0xff]
    %v129 = vld [vmem:[#allocation7 + $0x10] sm:$0xff]
    %v130 = vld [vmem:[#allocation7 + $0x18] sm:$0xff]
    %v131 = vld [vmem:[#allocation7 + $0x20] sm:$0xff]
    %v132 = vld [vmem:[#allocation7 + $0x28] sm:$0xff]
    %v133 = vld [vmem:[#allocation7 + $0x30] sm:$0xff]
    %v134 = vld [vmem:[#allocation7 + $0x38] sm:$0xff]
    %v135 = vld [vmem:[#allocation7 + $0x40] sm:$0xff]
    %v136 = vld [vmem:[#allocation7 + $0x48] sm:$0xff]
    %v137 = vld [vmem:[#allocation7 + $0x50] sm:$0xff]
    %v138 = vld [vmem:[#allocation7 + $0x58] sm:$0xff]
    %v139 = vld [vmem:[#allocation7 + $0x60] sm:$0xff]
    %v140 = vld [vmem:[#allocation7 + $0x68] sm:$0xff]
    %v141 = vld [vmem:[#allocation7 + $0x70] sm:$0xff]
    %v142 = vld [vmem:[#allocation7 + $0x78] sm:$0xff]
    %v143 = vld [vmem:[#allocation7 + $0x80] sm:$0xff]
    %v144 = vld [vmem:[#allocation7 + $0x88] sm:$0xff]
    %v145 = vld [vmem:[#allocation7 + $0x90] sm:$0xff]
    %v146 = vld [vmem:[#allocation7 + $0x98] sm:$0xff]
    %v147 = vld [vmem:[#allocation7 + $0xa0] sm:$0xff]
    %v148 = vld [vmem:[#allocation7 + $0xa8] sm:$0xff]
    %v149 = vld [vmem:[#allocation7 + $0xb0] sm:$0xff]
    %v150 = vld [vmem:[#allocation7 + $0xb8] sm:$0xff]
    %v151 = vld [vmem:[#allocation7 + $0xc0] sm:$0xff]
    %v152 = vld [vmem:[#allocation7 + $0xc8] sm:$0xff]
    %v153 = vld [vmem:[#allocation7 + $0xd0] sm:$0xff]
    %v154 = vld [vmem:[#allocation7 + $0xd8] sm:$0xff]
    %v155 = vld [vmem:[#allocation7 + $0xe0] sm:$0xff]
    %v156 = vld [vmem:[#allocation7 + $0xe8] sm:$0xff]
    %v157 = vld [vmem:[#allocation7 + $0xf0] sm:$0xff]
    %v158 = vld [vmem:[#allocation7 + $0xf8] sm:$0xff]
    %v159 = vld [vmem:[#allocation7 + $0x100] sm:$0xff]
    %v160 = vld [vmem:[#allocation7 + $0x108] sm:$0xff]
    %v161 = vld [vmem:[#allocation7 + $0x110] sm:$0xff]
    %v162 = vld [vmem:[#allocation7 + $0x118] sm:$0xff]
    %v163 = vld [vmem:[#allocation7 + $0x120] sm:$0xff]
    %v164 = vld [vmem:[#allocation7 + $0x128] sm:$0xff]
    %v165 = vld [vmem:[#allocation7 + $0x130] sm:$0xff]
    %v166 = vld [vmem:[#allocation7 + $0x138] sm:$0xff]
    %v167 = vld [vmem:[#allocation7 + $0x140] sm:$0xff]
    %v168 = vld [vmem:[#allocation7 + $0x148] sm:$0xff]
    %v169 = vld [vmem:[#allocation7 + $0x150] sm:$0xff]
    %v170 = vld [vmem:[#allocation7 + $0x158] sm:$0xff]
    %v171 = vld [vmem:[#allocation7 + $0x160] sm:$0xff]
    %v172 = vld [vmem:[#allocation7 + $0x168] sm:$0xff]
    %v173 = vld [vmem:[#allocation7 + $0x170] sm:$0xff]
    %v174 = vld [vmem:[#allocation7 + $0x178] sm:$0xff]
    %v175 = vld [vmem:[#allocation7 + $0x180] sm:$0xff]
    %v176 = vld [vmem:[#allocation7 + $0x188] sm:$0xff]
    %v177 = vld [vmem:[#allocation7 + $0x190] sm:$0xff]
    %v178 = vld [vmem:[#allocation7 + $0x198] sm:$0xff]
    %v179 = vld [vmem:[#allocation7 + $0x1a0] sm:$0xff]
    %v180 = vld [vmem:[#allocation7 + $0x1a8] sm:$0xff]
    %v181 = vld [vmem:[#allocation7 + $0x1b0] sm:$0xff]
    %v182 = vld [vmem:[#allocation7 + $0x1b8] sm:$0xff]
    %v183 = vld [vmem:[#allocation7 + $0x1c0] sm:$0xff]
    %v184 = vld [vmem:[#allocation7 + $0x1c8] sm:$0xff]
    %v185 = vld [vmem:[#allocation7 + $0x1d0] sm:$0xff]
    %v186 = vld [vmem:[#allocation7 + $0x1d8] sm:$0xff]
    %v187 = vld [vmem:[#allocation7 + $0x1e0] sm:$0xff]
    %v188 = vld [vmem:[#allocation7 + $0x1e8] sm:$0xff]
    %v189 = vld [vmem:[#allocation7 + $0x1f0] sm:$0xff]
    %v190 = vld [vmem:[#allocation7 + $0x1f8] sm:$0xff]
    %v191 = vld [vmem:[#allocation7 + $0x200] sm:$0xff]
    %v192 = vld [vmem:[#allocation7 + $0x208] sm:$0xff]
    %v193 = vld [vmem:[#allocation7 + $0x210] sm:$0xff]
    %v194 = vld [vmem:[#allocation7 + $0x218] sm:$0xff]
    %v195 = vld [vmem:[#allocation7 + $0x220] sm:$0xff]
    %v196 = vld [vmem:[#allocation7 + $0x228] sm:$0xff]
    %v197 = vld [vmem:[#allocation7 + $0x230] sm:$0xff]
    %v198 = vld [vmem:[#allocation7 + $0x238] sm:$0xff]
    %v199 = vld [vmem:[#allocation7 + $0x240] sm:$0xff]
    %v200 = vld [vmem:[#allocation7 + $0x248] sm:$0xff]
    %v201 = vld [vmem:[#allocation7 + $0x250] sm:$0xff]
    %v202 = vld [vmem:[#allocation7 + $0x258] sm:$0xff]
    %v203 = vld [vmem:[#allocation7 + $0x260] sm:$0xff]
    %v204 = vld [vmem:[#allocation7 + $0x268] sm:$0xff]
    %v205 = vld [vmem:[#allocation7 + $0x270] sm:$0xff]
    %v206 = vld [vmem:[#allocation7 + $0x278] sm:$0xff]
    %v207 = vld [vmem:[#allocation7 + $0x280] sm:$0xff]
    %v208 = vld [vmem:[#allocation7 + $0x288] sm:$0xff]
    %v209 = vld [vmem:[#allocation7 + $0x290] sm:$0xff]
    %v210 = vld [vmem:[#allocation7 + $0x298] sm:$0xff]
    %v211 = vld [vmem:[#allocation7 + $0x2a0] sm:$0xff]
    %v212 = vld [vmem:[#allocation7 + $0x2a8] sm:$0xff]
    %v213 = vld [vmem:[#allocation7 + $0x2b0] sm:$0xff]
    %v214 = vld [vmem:[#allocation7 + $0x2b8] sm:$0xff]
    %v215 = vld [vmem:[#allocation7 + $0x2c0] sm:$0xff]
    %v216 = vld [vmem:[#allocation7 + $0x2c8] sm:$0xff]
    %v217 = vld [vmem:[#allocation7 + $0x2d0] sm:$0xff]
    %v218 = vld [vmem:[#allocation7 + $0x2d8] sm:$0xff]
    %v219 = vld [vmem:[#allocation7 + $0x2e0] sm:$0xff]
    %v220 = vld [vmem:[#allocation7 + $0x2e8] sm:$0xff]
    %v221 = vld [vmem:[#allocation7 + $0x2f0] sm:$0xff]
    %v222 = vld [vmem:[#allocation7 + $0x2f8] sm:$0xff]
    %v223 = vld [vmem:[#allocation7 + $0x300] sm:$0xff]
    %v224 = vld [vmem:[#allocation7 + $0x308] sm:$0xff]
    %v225 = vld [vmem:[#allocation7 + $0x310] sm:$0xff]
    %v226 = vld [vmem:[#allocation7 + $0x318] sm:$0xff]
    %v227 = vld [vmem:[#allocation7 + $0x320] sm:$0xff]
    %v228 = vld [vmem:[#allocation7 + $0x328] sm:$0xff]
    %v229 = vld [vmem:[#allocation7 + $0x330] sm:$0xff]
    %v230 = vld [vmem:[#allocation7 + $0x338] sm:$0xff]
    %v231 = vld [vmem:[#allocation7 + $0x340] sm:$0xff]
    %v232 = vld [vmem:[#allocation7 + $0x348] sm:$0xff]
    %v233 = vld [vmem:[#allocation7 + $0x350] sm:$0xff]
    %v234 = vld [vmem:[#allocation7 + $0x358] sm:$0xff]
    %v235 = vld [vmem:[#allocation7 + $0x360] sm:$0xff]
    %v236 = vld [vmem:[#allocation7 + $0x368] sm:$0xff]
    %v237 = vld [vmem:[#allocation7 + $0x370] sm:$0xff]
    %v238 = vld [vmem:[#allocation7 + $0x378] sm:$0xff]
    %v239 = vld [vmem:[#allocation7 + $0x380] sm:$0xff]
    %v240 = vld [vmem:[#allocation7 + $0x388] sm:$0xff]
    %v241 = vld [vmem:[#allocation7 + $0x390] sm:$0xff]
    %v242 = vld [vmem:[#allocation7 + $0x398] sm:$0xff]
    %v243 = vld [vmem:[#allocation7 + $0x3a0] sm:$0xff]
    %v244 = vld [vmem:[#allocation7 + $0x3a8] sm:$0xff]
    %v245 = vld [vmem:[#allocation7 + $0x3b0] sm:$0xff]
    %v246 = vld [vmem:[#allocation7 + $0x3b8] sm:$0xff]
    %v247 = vld [vmem:[#allocation7 + $0x3c0] sm:$0xff]
    %v248 = vld [vmem:[#allocation7 + $0x3c8] sm:$0xff]
    %v249 = vld [vmem:[#allocation7 + $0x3d0] sm:$0xff]
    %v250 = vld [vmem:[#allocation7 + $0x3d8] sm:$0xff]
    %v251 = vld [vmem:[#allocation7 + $0x3e0] sm:$0xff]
    %v252 = vld [vmem:[#allocation7 + $0x3e8] sm:$0xff]
    %v253 = vld [vmem:[#allocation7 + $0x3f0] sm:$0xff]
    %v254 = vld [vmem:[#allocation7 + $0x3f8] sm:$0xff]
    %v255 = vld [vmem:[#allocation7 + $0x400] sm:$0xff]
    %v256 = vld [vmem:[#allocation7 + $0x408] sm:$0xff]
    %v257 = vld [vmem:[#allocation7 + $0x410] sm:$0xff]
    %v258 = vld [vmem:[#allocation7 + $0x418] sm:$0xff]
    %v259 = vld [vmem:[#allocation7 + $0x420] sm:$0xff]
    %v260 = vld [vmem:[#allocation7 + $0x428] sm:$0xff]
    %v261 = vld [vmem:[#allocation7 + $0x430] sm:$0xff]
    %v262 = vld [vmem:[#allocation7 + $0x438] sm:$0xff]
    %v263 = vld [vmem:[#allocation7 + $0x440] sm:$0xff]
    %v264 = vld [vmem:[#allocation7 + $0x448] sm:$0xff]
    %v265 = vld [vmem:[#allocation7 + $0x450] sm:$0xff]
    %v266 = vld [vmem:[#allocation7 + $0x458] sm:$0xff]
    %v267 = vld [vmem:[#allocation7 + $0x460] sm:$0xff]
    %v268 = vld [vmem:[#allocation7 + $0x468] sm:$0xff]
    %v269 = vld [vmem:[#allocation7 + $0x470] sm:$0xff]
    %v270 = vld [vmem:[#allocation7 + $0x478] sm:$0xff]
    %v271 = vld [vmem:[#allocation7 + $0x480] sm:$0xff]
    %v272 = vld [vmem:[#allocation7 + $0x488] sm:$0xff]
    %v273 = vld [vmem:[#allocation7 + $0x490] sm:$0xff]
    %v274 = vld [vmem:[#allocation7 + $0x498] sm:$0xff]
    %v275 = vld [vmem:[#allocation7 + $0x4a0] sm:$0xff]
    %v276 = vld [vmem:[#allocation7 + $0x4a8] sm:$0xff]
    %v277 = vld [vmem:[#allocation7 + $0x4b0] sm:$0xff]
    %v278 = vld [vmem:[#allocation7 + $0x4b8] sm:$0xff]
    %v279 = vld [vmem:[#allocation7 + $0x4c0] sm:$0xff]
    %v280 = vld [vmem:[#allocation7 + $0x4c8] sm:$0xff]
    %v281 = vld [vmem:[#allocation7 + $0x4d0] sm:$0xff]
    %v282 = vld [vmem:[#allocation7 + $0x4d8] sm:$0xff]
    %v283 = vld [vmem:[#allocation7 + $0x4e0] sm:$0xff]
    %v284 = vld [vmem:[#allocation7 + $0x4e8] sm:$0xff]
    %v285 = vld [vmem:[#allocation7 + $0x4f0] sm:$0xff]
    %v286 = vld [vmem:[#allocation7 + $0x4f8] sm:$0xff]
    %v287 = vld [vmem:[#allocation7 + $0x500] sm:$0xff]
    %v288 = vld [vmem:[#allocation7 + $0x508] sm:$0xff]
    %v289 = vld [vmem:[#allocation7 + $0x510] sm:$0xff]
    %v290 = vld [vmem:[#allocation7 + $0x518] sm:$0xff]
    %v291 = vld [vmem:[#allocation7 + $0x520] sm:$0xff]
    %v292 = vld [vmem:[#allocation7 + $0x528] sm:$0xff]
    %v293 = vld [vmem:[#allocation7 + $0x530] sm:$0xff]
    %v294 = vld [vmem:[#allocation7 + $0x538] sm:$0xff]
    %v295 = vld [vmem:[#allocation7 + $0x540] sm:$0xff]
    %v296 = vld [vmem:[#allocation7 + $0x548] sm:$0xff]
    %v297 = vld [vmem:[#allocation7 + $0x550] sm:$0xff]
    %v298 = vld [vmem:[#allocation7 + $0x558] sm:$0xff]
    %v299 = vld [vmem:[#allocation7 + $0x560] sm:$0xff]
    %v300 = vld [vmem:[#allocation7 + $0x568] sm:$0xff]
    %v301 = vld [vmem:[#allocation7 + $0x570] sm:$0xff]
    %v302 = vld [vmem:[#allocation7 + $0x578] sm:$0xff]
    %v303 = vld [vmem:[#allocation7 + $0x580] sm:$0xff]
    %v304 = vld [vmem:[#allocation7 + $0x588] sm:$0xff]
    %v305 = vld [vmem:[#allocation7 + $0x590] sm:$0xff]
    %v306 = vld [vmem:[#allocation7 + $0x598] sm:$0xff]
    %v307 = vld [vmem:[#allocation7 + $0x5a0] sm:$0xff]
    %v308 = vld [vmem:[#allocation7 + $0x5a8] sm:$0xff]
    %v309 = vld [vmem:[#allocation7 + $0x5b0] sm:$0xff]
    %v310 = vld [vmem:[#allocation7 + $0x5b8] sm:$0xff]
    %v311 = vld [vmem:[#allocation7 + $0x5c0] sm:$0xff]
    %v312 = vld [vmem:[#allocation7 + $0x5c8] sm:$0xff]
    %v313 = vld [vmem:[#allocation7 + $0x5d0] sm:$0xff]
    %v314 = vld [vmem:[#allocation7 + $0x5d8] sm:$0xff]
    %v315 = vld [vmem:[#allocation7 + $0x5e0] sm:$0xff]
    %v316 = vld [vmem:[#allocation7 + $0x5e8] sm:$0xff]
    %v317 = vld [vmem:[#allocation7 + $0x5f0] sm:$0xff]
    %v318 = vld [vmem:[#allocation7 + $0x5f8] sm:$0xff]
    %v319 = vld [vmem:[#allocation7 + $0x600] sm:$0xff]
    %v320 = vld [vmem:[#allocation7 + $0x608] sm:$0xff]
    %v321 = vld [vmem:[#allocation7 + $0x610] sm:$0xff]
    %v322 = vld [vmem:[#allocation7 + $0x618] sm:$0xff]
    %v323 = vld [vmem:[%s3] sm:$0xf]
    %v325 = vlaneseq
    %v326 = vshrl.u32 %v325, 7
    %v327 = vsub.s32 0, %v326
    %v328 = vrot.slane %v323, %v327
    %v329 = vlaneseq
    %v330 = vshrl.u32 %v329, 7
    %v331 = vsub.s32 1, %v330
    %v332 = vrot.slane %v323, %v331
    %v333 = vlaneseq
    %v334 = vshrl.u32 %v333, 7
    %v335 = vsub.s32 2, %v334
    %v336 = vrot.slane %v323, %v335
    %v337 = vlaneseq
    %v338 = vshrl.u32 %v337, 7
    %v339 = vsub.s32 3, %v338
    %v340 = vrot.slane %v323, %v339
    %v353 = vunpack.c.l.b16 %v119
    %v354 = vunpack.c.h.b16 %v119
    %v355 = vunpack.c.l.b16 %v120
    %v356 = vunpack.c.h.b16 %v120
    %v357 = vunpack.c.l.b16 %v121
    %v358 = vunpack.c.h.b16 %v121
    %v359 = vunpack.c.l.b16 %v122
    %v360 = vunpack.c.l.b16 %v123
    %v361 = vunpack.c.h.b16 %v123
    %v362 = vunpack.c.l.b16 %v124
    %v363 = vunpack.c.h.b16 %v124
    %v364 = vunpack.c.l.b16 %v125
    %v365 = vunpack.c.h.b16 %v125
    %v366 = vunpack.c.l.b16 %v126
    %v367 = vpack.c.b16 %v360, %v353
    %v368 = vpack.c.b16 %v361, %v354
    %v369 = vpack.c.b16 %v362, %v355
    %v370 = vpack.c.b16 %v363, %v356
    %v371 = vpack.c.b16 %v364, %v357
    %v372 = vpack.c.b16 %v365, %v358
    %v373 = vpack.c.b16 %v366, %v359
    %v576 = vunpack.c.l.b16 %v127
    %v577 = vunpack.c.h.b16 %v127
    %v578 = vunpack.c.l.b16 %v128
    %v579 = vunpack.c.h.b16 %v128
    %v580 = vunpack.c.l.b16 %v129
    %v581 = vunpack.c.h.b16 %v129
    %v582 = vunpack.c.l.b16 %v130
    %v583 = vunpack.c.h.b16 %v130
    %v584 = vunpack.c.l.b16 %v131
    %v585 = vunpack.c.h.b16 %v131
    %v586 = vunpack.c.l.b16 %v132
    %v587 = vunpack.c.h.b16 %v132
    %v588 = vunpack.c.l.b16 %v133
    %v589 = vunpack.c.h.b16 %v133
    %v590 = vunpack.c.l.b16 %v134
    %v591 = vunpack.c.h.b16 %v134
    %v592 = vunpack.c.l.b16 %v135
    %v593 = vunpack.c.h.b16 %v135
    %v594 = vunpack.c.l.b16 %v136
    %v595 = vunpack.c.h.b16 %v136
    %v596 = vunpack.c.l.b16 %v137
    %v597 = vunpack.c.h.b16 %v137
    %v598 = vunpack.c.l.b16 %v138
    %v599 = vunpack.c.h.b16 %v138
    %v600 = vunpack.c.l.b16 %v139
    %v601 = vunpack.c.h.b16 %v139
    %v602 = vunpack.c.l.b16 %v140
    %v603 = vunpack.c.h.b16 %v140
    %v604 = vunpack.c.l.b16 %v141
    %v605 = vunpack.c.h.b16 %v141
    %v606 = vunpack.c.l.b16 %v142
    %v607 = vunpack.c.h.b16 %v142
    %v608 = vunpack.c.l.b16 %v143
    %v609 = vunpack.c.h.b16 %v143
    %v610 = vunpack.c.l.b16 %v144
    %v611 = vunpack.c.h.b16 %v144
    %v612 = vunpack.c.l.b16 %v145
    %v613 = vunpack.c.h.b16 %v145
    %v614 = vunpack.c.l.b16 %v146
    %v615 = vunpack.c.h.b16 %v146
    %v616 = vunpack.c.l.b16 %v147
    %v617 = vunpack.c.h.b16 %v147
    %v618 = vunpack.c.l.b16 %v148
    %v619 = vunpack.c.h.b16 %v148
    %v620 = vunpack.c.l.b16 %v149
    %v621 = vunpack.c.h.b16 %v149
    %v622 = vunpack.c.l.b16 %v150
    %v623 = vunpack.c.h.b16 %v150
    %v624 = vunpack.c.l.b16 %v151
    %v625 = vunpack.c.h.b16 %v151
    %v626 = vunpack.c.l.b16 %v152
    %v627 = vunpack.c.h.b16 %v152
    %v628 = vunpack.c.l.b16 %v153
    %v629 = vunpack.c.h.b16 %v153
    %v630 = vunpack.c.l.b16 %v154
    %v631 = vunpack.c.h.b16 %v154
    %v632 = vunpack.c.l.b16 %v155
    %v633 = vunpack.c.h.b16 %v155
    %v634 = vunpack.c.l.b16 %v156
    %v635 = vunpack.c.h.b16 %v156
    %v636 = vunpack.c.l.b16 %v157
    %v637 = vunpack.c.h.b16 %v157
    %v638 = vunpack.c.l.b16 %v158
    %v639 = vunpack.c.h.b16 %v158
    %v640 = vunpack.c.l.b16 %v159
    %v641 = vunpack.c.h.b16 %v159
    %v642 = vunpack.c.l.b16 %v160
    %v643 = vunpack.c.h.b16 %v160
    %v644 = vunpack.c.l.b16 %v161
    %v645 = vunpack.c.h.b16 %v161
    %v646 = vunpack.c.l.b16 %v162
    %v647 = vunpack.c.h.b16 %v162
    %v648 = vunpack.c.l.b16 %v163
    %v649 = vunpack.c.h.b16 %v163
    %v650 = vunpack.c.l.b16 %v164
    %v651 = vunpack.c.h.b16 %v164
    %v652 = vunpack.c.l.b16 %v165
    %v653 = vunpack.c.h.b16 %v165
    %v654 = vunpack.c.l.b16 %v166
    %v655 = vunpack.c.h.b16 %v166
    %v656 = vunpack.c.l.b16 %v167
    %v657 = vunpack.c.h.b16 %v167
    %v658 = vunpack.c.l.b16 %v168
    %v659 = vunpack.c.h.b16 %v168
    %v660 = vunpack.c.l.b16 %v169
    %v661 = vunpack.c.h.b16 %v169
    %v662 = vunpack.c.l.b16 %v170
    %v663 = vunpack.c.h.b16 %v170
    %v664 = vunpack.c.l.b16 %v171
    %v665 = vunpack.c.h.b16 %v171
    %v666 = vunpack.c.l.b16 %v172
    %v667 = vunpack.c.h.b16 %v172
    %v668 = vunpack.c.l.b16 %v173
    %v669 = vunpack.c.h.b16 %v173
    %v670 = vunpack.c.l.b16 %v174
    %v671 = vunpack.c.h.b16 %v174
    %v672 = vunpack.c.l.b16 %v175
    %v673 = vunpack.c.h.b16 %v175
    %v674 = vunpack.c.l.b16 %v176
    %v675 = vunpack.c.h.b16 %v176
    %v676 = vunpack.c.l.b16 %v177
    %v677 = vunpack.c.h.b16 %v177
    %v678 = vunpack.c.l.b16 %v178
    %v679 = vunpack.c.h.b16 %v178
    %v680 = vunpack.c.l.b16 %v179
    %v681 = vunpack.c.h.b16 %v179
    %v682 = vunpack.c.l.b16 %v180
    %v683 = vunpack.c.h.b16 %v180
    %v684 = vunpack.c.l.b16 %v181
    %v685 = vunpack.c.h.b16 %v181
    %v686 = vunpack.c.l.b16 %v182
    %v687 = vunpack.c.h.b16 %v182
    %v688 = vunpack.c.l.b16 %v183
    %v689 = vunpack.c.h.b16 %v183
    %v690 = vunpack.c.l.b16 %v184
    %v691 = vunpack.c.h.b16 %v184
    %v692 = vunpack.c.l.b16 %v185
    %v693 = vunpack.c.h.b16 %v185
    %v694 = vunpack.c.l.b16 %v186
    %v695 = vunpack.c.h.b16 %v186
    %v696 = vunpack.c.l.b16 %v187
    %v697 = vunpack.c.h.b16 %v187
    %v698 = vunpack.c.l.b16 %v188
    %v699 = vunpack.c.h.b16 %v188
    %v700 = vunpack.c.l.b16 %v189
    %v701 = vunpack.c.h.b16 %v189
    %v702 = vunpack.c.l.b16 %v190
    %v703 = vunpack.c.h.b16 %v190
    %v704 = vunpack.c.l.b16 %v191
    %v705 = vunpack.c.h.b16 %v191
    %v706 = vunpack.c.l.b16 %v192
    %v707 = vunpack.c.h.b16 %v192
    %v708 = vunpack.c.l.b16 %v193
    %v709 = vunpack.c.h.b16 %v193
    %v710 = vunpack.c.l.b16 %v194
    %v711 = vunpack.c.h.b16 %v194
    %v712 = vunpack.c.l.b16 %v195
    %v713 = vunpack.c.h.b16 %v195
    %v714 = vunpack.c.l.b16 %v196
    %v715 = vunpack.c.h.b16 %v196
    %v716 = vunpack.c.l.b16 %v197
    %v717 = vunpack.c.h.b16 %v197
    %v718 = vunpack.c.l.b16 %v198
    %v719 = vunpack.c.h.b16 %v198
    %v720 = vunpack.c.l.b16 %v199
    %v721 = vunpack.c.h.b16 %v199
    %v722 = vunpack.c.l.b16 %v200
    %v723 = vunpack.c.h.b16 %v200
    %v724 = vunpack.c.l.b16 %v201
    %v725 = vunpack.c.h.b16 %v201
    %v726 = vunpack.c.l.b16 %v202
    %v727 = vunpack.c.h.b16 %v202
    %v728 = vunpack.c.l.b16 %v203
    %v729 = vunpack.c.h.b16 %v203
    %v730 = vunpack.c.l.b16 %v204
    %v731 = vunpack.c.h.b16 %v204
    %v732 = vunpack.c.l.b16 %v205
    %v733 = vunpack.c.h.b16 %v205
    %v734 = vunpack.c.l.b16 %v206
    %v735 = vunpack.c.h.b16 %v206
    %v736 = vunpack.c.l.b16 %v207
    %v737 = vunpack.c.h.b16 %v207
    %v738 = vunpack.c.l.b16 %v208
    %v739 = vunpack.c.h.b16 %v208
    %v740 = vunpack.c.l.b16 %v209
    %v741 = vunpack.c.h.b16 %v209
    %v742 = vunpack.c.l.b16 %v210
    %v743 = vunpack.c.h.b16 %v210
    %v744 = vunpack.c.l.b16 %v211
    %v745 = vunpack.c.h.b16 %v211
    %v746 = vunpack.c.l.b16 %v212
    %v747 = vunpack.c.h.b16 %v212
    %v748 = vunpack.c.l.b16 %v213
    %v749 = vunpack.c.h.b16 %v213
    %v750 = vunpack.c.l.b16 %v214
    %v751 = vunpack.c.h.b16 %v214
    %v752 = vunpack.c.l.b16 %v215
    %v753 = vunpack.c.h.b16 %v215
    %v754 = vunpack.c.l.b16 %v216
    %v755 = vunpack.c.h.b16 %v216
    %v756 = vunpack.c.l.b16 %v217
    %v757 = vunpack.c.h.b16 %v217
    %v758 = vunpack.c.l.b16 %v218
    %v759 = vunpack.c.h.b16 %v218
    %v760 = vunpack.c.l.b16 %v219
    %v761 = vunpack.c.h.b16 %v219
    %v762 = vunpack.c.l.b16 %v220
    %v763 = vunpack.c.h.b16 %v220
    %v764 = vunpack.c.l.b16 %v221
    %v765 = vunpack.c.h.b16 %v221
    %v766 = vunpack.c.l.b16 %v222
    %v767 = vunpack.c.h.b16 %v222
    %v768 = vunpack.c.l.b16 %v223
    %v769 = vunpack.c.h.b16 %v223
    %v770 = vunpack.c.l.b16 %v224
    %v771 = vunpack.c.h.b16 %v224
    %v772 = vunpack.c.l.b16 %v225
    %v773 = vunpack.c.h.b16 %v225
    %v774 = vunpack.c.l.b16 %v226
    %v775 = vunpack.c.h.b16 %v226
    %v776 = vunpack.c.l.b16 %v227
    %v777 = vunpack.c.h.b16 %v227
    %v778 = vunpack.c.l.b16 %v228
    %v779 = vunpack.c.h.b16 %v228
    %v780 = vunpack.c.l.b16 %v229
    %v781 = vunpack.c.h.b16 %v229
    %v782 = vunpack.c.l.b16 %v230
    %v783 = vunpack.c.h.b16 %v230
    %v784 = vunpack.c.l.b16 %v231
    %v785 = vunpack.c.h.b16 %v231
    %v786 = vunpack.c.l.b16 %v232
    %v787 = vunpack.c.h.b16 %v232
    %v788 = vunpack.c.l.b16 %v233
    %v789 = vunpack.c.h.b16 %v233
    %v790 = vunpack.c.l.b16 %v234
    %v791 = vunpack.c.h.b16 %v234
    %v792 = vunpack.c.l.b16 %v235
    %v793 = vunpack.c.h.b16 %v235
    %v794 = vunpack.c.l.b16 %v236
    %v795 = vunpack.c.h.b16 %v236
    %v796 = vunpack.c.l.b16 %v237
    %v797 = vunpack.c.h.b16 %v237
    %v798 = vunpack.c.l.b16 %v238
    %v799 = vunpack.c.h.b16 %v238
    %v800 = vunpack.c.l.b16 %v239
    %v801 = vunpack.c.h.b16 %v239
    %v802 = vunpack.c.l.b16 %v240
    %v803 = vunpack.c.h.b16 %v240
    %v804 = vunpack.c.l.b16 %v241
    %v805 = vunpack.c.h.b16 %v241
    %v806 = vunpack.c.l.b16 %v242
    %v807 = vunpack.c.h.b16 %v242
    %v808 = vunpack.c.l.b16 %v243
    %v809 = vunpack.c.h.b16 %v243
    %v810 = vunpack.c.l.b16 %v244
    %v811 = vunpack.c.h.b16 %v244
    %v812 = vunpack.c.l.b16 %v245
    %v813 = vunpack.c.h.b16 %v245
    %v814 = vunpack.c.l.b16 %v246
    %v815 = vunpack.c.h.b16 %v246
    %v816 = vunpack.c.l.b16 %v247
    %v817 = vunpack.c.h.b16 %v247
    %v818 = vunpack.c.l.b16 %v248
    %v819 = vunpack.c.h.b16 %v248
    %v820 = vunpack.c.l.b16 %v249
    %v821 = vunpack.c.h.b16 %v249
    %v822 = vunpack.c.l.b16 %v250
    %v823 = vunpack.c.h.b16 %v250
    %v824 = vunpack.c.l.b16 %v251
    %v825 = vunpack.c.h.b16 %v251
    %v826 = vunpack.c.l.b16 %v252
    %v827 = vunpack.c.h.b16 %v252
    %v828 = vunpack.c.l.b16 %v253
    %v829 = vunpack.c.h.b16 %v253
    %v830 = vunpack.c.l.b16 %v254
    %v831 = vunpack.c.h.b16 %v254
    %v832 = vunpack.c.l.b16 %v255
    %v833 = vunpack.c.h.b16 %v255
    %v834 = vunpack.c.l.b16 %v256
    %v835 = vunpack.c.h.b16 %v256
    %v836 = vunpack.c.l.b16 %v257
    %v837 = vunpack.c.h.b16 %v257
    %v838 = vunpack.c.l.b16 %v258
    %v839 = vunpack.c.h.b16 %v258
    %v840 = vunpack.c.l.b16 %v259
    %v841 = vunpack.c.h.b16 %v259
    %v842 = vunpack.c.l.b16 %v260
    %v843 = vunpack.c.h.b16 %v260
    %v844 = vunpack.c.l.b16 %v261
    %v845 = vunpack.c.h.b16 %v261
    %v846 = vunpack.c.l.b16 %v262
    %v847 = vunpack.c.h.b16 %v262
    %v848 = vunpack.c.l.b16 %v263
    %v849 = vunpack.c.h.b16 %v263
    %v850 = vunpack.c.l.b16 %v264
    %v851 = vunpack.c.h.b16 %v264
    %v852 = vunpack.c.l.b16 %v265
    %v853 = vunpack.c.h.b16 %v265
    %v854 = vunpack.c.l.b16 %v266
    %v855 = vunpack.c.h.b16 %v266
    %v856 = vunpack.c.l.b16 %v267
    %v857 = vunpack.c.h.b16 %v267
    %v858 = vunpack.c.l.b16 %v268
    %v859 = vunpack.c.h.b16 %v268
    %v860 = vunpack.c.l.b16 %v269
    %v861 = vunpack.c.h.b16 %v269
    %v862 = vunpack.c.l.b16 %v270
    %v863 = vunpack.c.h.b16 %v270
    %v864 = vunpack.c.l.b16 %v271
    %v865 = vunpack.c.h.b16 %v271
    %v866 = vunpack.c.l.b16 %v272
    %v867 = vunpack.c.h.b16 %v272
    %v868 = vunpack.c.l.b16 %v273
    %v869 = vunpack.c.h.b16 %v273
    %v870 = vunpack.c.l.b16 %v274
    %v871 = vunpack.c.h.b16 %v274
    %v872 = vunpack.c.l.b16 %v275
    %v873 = vunpack.c.h.b16 %v275
    %v874 = vunpack.c.l.b16 %v276
    %v875 = vunpack.c.h.b16 %v276
    %v876 = vunpack.c.l.b16 %v277
    %v877 = vunpack.c.h.b16 %v277
    %v878 = vunpack.c.l.b16 %v278
    %v879 = vunpack.c.h.b16 %v278
    %v880 = vunpack.c.l.b16 %v279
    %v881 = vunpack.c.h.b16 %v279
    %v882 = vunpack.c.l.b16 %v280
    %v883 = vunpack.c.h.b16 %v280
    %v884 = vunpack.c.l.b16 %v281
    %v885 = vunpack.c.h.b16 %v281
    %v886 = vunpack.c.l.b16 %v282
    %v887 = vunpack.c.h.b16 %v282
    %v888 = vunpack.c.l.b16 %v283
    %v889 = vunpack.c.h.b16 %v283
    %v890 = vunpack.c.l.b16 %v284
    %v891 = vunpack.c.h.b16 %v284
    %v892 = vunpack.c.l.b16 %v285
    %v893 = vunpack.c.h.b16 %v285
    %v894 = vunpack.c.l.b16 %v286
    %v895 = vunpack.c.h.b16 %v286
    %v896 = vunpack.c.l.b16 %v287
    %v897 = vunpack.c.h.b16 %v287
    %v898 = vunpack.c.l.b16 %v288
    %v899 = vunpack.c.h.b16 %v288
    %v900 = vunpack.c.l.b16 %v289
    %v901 = vunpack.c.h.b16 %v289
    %v902 = vunpack.c.l.b16 %v290
    %v903 = vunpack.c.h.b16 %v290
    %v904 = vunpack.c.l.b16 %v291
    %v905 = vunpack.c.h.b16 %v291
    %v906 = vunpack.c.l.b16 %v292
    %v907 = vunpack.c.h.b16 %v292
    %v908 = vunpack.c.l.b16 %v293
    %v909 = vunpack.c.h.b16 %v293
    %v910 = vunpack.c.l.b16 %v294
    %v911 = vunpack.c.h.b16 %v294
    %v912 = vunpack.c.l.b16 %v295
    %v913 = vunpack.c.h.b16 %v295
    %v914 = vunpack.c.l.b16 %v296
    %v915 = vunpack.c.h.b16 %v296
    %v916 = vunpack.c.l.b16 %v297
    %v917 = vunpack.c.h.b16 %v297
    %v918 = vunpack.c.l.b16 %v298
    %v919 = vunpack.c.h.b16 %v298
    %v920 = vunpack.c.l.b16 %v299
    %v921 = vunpack.c.h.b16 %v299
    %v922 = vunpack.c.l.b16 %v300
    %v923 = vunpack.c.h.b16 %v300
    %v924 = vunpack.c.l.b16 %v301
    %v925 = vunpack.c.h.b16 %v301
    %v926 = vunpack.c.l.b16 %v302
    %v927 = vunpack.c.h.b16 %v302
    %v928 = vunpack.c.l.b16 %v303
    %v929 = vunpack.c.h.b16 %v303
    %v930 = vunpack.c.l.b16 %v304
    %v931 = vunpack.c.h.b16 %v304
    %v932 = vunpack.c.l.b16 %v305
    %v933 = vunpack.c.h.b16 %v305
    %v934 = vunpack.c.l.b16 %v306
    %v935 = vunpack.c.h.b16 %v306
    %v936 = vunpack.c.l.b16 %v307
    %v937 = vunpack.c.h.b16 %v307
    %v938 = vunpack.c.l.b16 %v308
    %v939 = vunpack.c.h.b16 %v308
    %v940 = vunpack.c.l.b16 %v309
    %v941 = vunpack.c.h.b16 %v309
    %v942 = vunpack.c.l.b16 %v310
    %v943 = vunpack.c.h.b16 %v310
    %v944 = vunpack.c.l.b16 %v311
    %v945 = vunpack.c.h.b16 %v311
    %v946 = vunpack.c.l.b16 %v312
    %v947 = vunpack.c.h.b16 %v312
    %v948 = vunpack.c.l.b16 %v313
    %v949 = vunpack.c.h.b16 %v313
    %v950 = vunpack.c.l.b16 %v314
    %v951 = vunpack.c.h.b16 %v314
    %v952 = vunpack.c.l.b16 %v315
    %v953 = vunpack.c.h.b16 %v315
    %v954 = vunpack.c.l.b16 %v316
    %v955 = vunpack.c.h.b16 %v316
    %v956 = vunpack.c.l.b16 %v317
    %v957 = vunpack.c.h.b16 %v317
    %v958 = vunpack.c.l.b16 %v318
    %v959 = vunpack.c.h.b16 %v318
    %v960 = vunpack.c.l.b16 %v319
    %v961 = vunpack.c.h.b16 %v319
    %v962 = vunpack.c.l.b16 %v320
    %v963 = vunpack.c.h.b16 %v320
    %v964 = vunpack.c.l.b16 %v321
    %v965 = vunpack.c.h.b16 %v321
    %v966 = vunpack.c.l.b16 %v322
    %v967 = vunpack.c.h.b16 %v322
    %v968 = vpack.c.b16 %v580, %v576
    %v969 = vpack.c.b16 %v581, %v577
    %v970 = vpack.c.b16 %v582, %v578
    %v971 = vpack.c.b16 %v583, %v579
    %v972 = vpack.c.b16 %v588, %v584
    %v973 = vpack.c.b16 %v589, %v585
    %v974 = vpack.c.b16 %v590, %v586
    %v975 = vpack.c.b16 %v591, %v587
    %v976 = vpack.c.b16 %v596, %v592
    %v977 = vpack.c.b16 %v597, %v593
    %v978 = vpack.c.b16 %v598, %v594
    %v979 = vpack.c.b16 %v599, %v595
    %v980 = vpack.c.b16 %v604, %v600
    %v981 = vpack.c.b16 %v605, %v601
    %v982 = vpack.c.b16 %v606, %v602
    %v983 = vpack.c.b16 %v607, %v603
    %v984 = vpack.c.b16 %v612, %v608
    %v985 = vpack.c.b16 %v613, %v609
    %v986 = vpack.c.b16 %v614, %v610
    %v987 = vpack.c.b16 %v615, %v611
    %v988 = vpack.c.b16 %v620, %v616
    %v989 = vpack.c.b16 %v621, %v617
    %v990 = vpack.c.b16 %v622, %v618
    %v991 = vpack.c.b16 %v623, %v619
    %v992 = vpack.c.b16 %v628, %v624
    %v993 = vpack.c.b16 %v629, %v625
    %v994 = vpack.c.b16 %v630, %v626
    %v995 = vpack.c.b16 %v631, %v627
    %v996 = vpack.c.b16 %v636, %v632
    %v997 = vpack.c.b16 %v637, %v633
    %v998 = vpack.c.b16 %v638, %v634
    %v999 = vpack.c.b16 %v639, %v635
    %v1000 = vpack.c.b16 %v644, %v640
    %v1001 = vpack.c.b16 %v645, %v641
    %v1002 = vpack.c.b16 %v646, %v642
    %v1003 = vpack.c.b16 %v647, %v643
    %v1004 = vpack.c.b16 %v652, %v648
    %v1005 = vpack.c.b16 %v653, %v649
    %v1006 = vpack.c.b16 %v654, %v650
    %v1007 = vpack.c.b16 %v655, %v651
    %v1008 = vpack.c.b16 %v660, %v656
    %v1009 = vpack.c.b16 %v661, %v657
    %v1010 = vpack.c.b16 %v662, %v658
    %v1011 = vpack.c.b16 %v663, %v659
    %v1012 = vpack.c.b16 %v668, %v664
    %v1013 = vpack.c.b16 %v669, %v665
    %v1014 = vpack.c.b16 %v670, %v666
    %v1015 = vpack.c.b16 %v671, %v667
    %v1016 = vpack.c.b16 %v676, %v672
    %v1017 = vpack.c.b16 %v677, %v673
    %v1018 = vpack.c.b16 %v678, %v674
    %v1019 = vpack.c.b16 %v679, %v675
    %v1020 = vpack.c.b16 %v684, %v680
    %v1021 = vpack.c.b16 %v685, %v681
    %v1022 = vpack.c.b16 %v686, %v682
    %v1023 = vpack.c.b16 %v687, %v683
    %v1024 = vpack.c.b16 %v692, %v688
    %v1025 = vpack.c.b16 %v693, %v689
    %v1026 = vpack.c.b16 %v694, %v690
    %v1027 = vpack.c.b16 %v695, %v691
    %v1028 = vpack.c.b16 %v700, %v696
    %v1029 = vpack.c.b16 %v701, %v697
    %v1030 = vpack.c.b16 %v702, %v698
    %v1031 = vpack.c.b16 %v703, %v699
    %v1032 = vpack.c.b16 %v708, %v704
    %v1033 = vpack.c.b16 %v709, %v705
    %v1034 = vpack.c.b16 %v710, %v706
    %v1035 = vpack.c.b16 %v711, %v707
    %v1036 = vpack.c.b16 %v716, %v712
    %v1037 = vpack.c.b16 %v717, %v713
    %v1038 = vpack.c.b16 %v718, %v714
    %v1039 = vpack.c.b16 %v719, %v715
    %v1040 = vpack.c.b16 %v724, %v720
    %v1041 = vpack.c.b16 %v725, %v721
    %v1042 = vpack.c.b16 %v726, %v722
    %v1043 = vpack.c.b16 %v727, %v723
    %v1044 = vpack.c.b16 %v732, %v728
    %v1045 = vpack.c.b16 %v733, %v729
    %v1046 = vpack.c.b16 %v734, %v730
    %v1047 = vpack.c.b16 %v735, %v731
    %v1048 = vpack.c.b16 %v740, %v736
    %v1049 = vpack.c.b16 %v741, %v737
    %v1050 = vpack.c.b16 %v742, %v738
    %v1051 = vpack.c.b16 %v743, %v739
    %v1052 = vpack.c.b16 %v748, %v744
    %v1053 = vpack.c.b16 %v749, %v745
    %v1054 = vpack.c.b16 %v750, %v746
    %v1055 = vpack.c.b16 %v751, %v747
    %v1056 = vpack.c.b16 %v756, %v752
    %v1057 = vpack.c.b16 %v757, %v753
    %v1058 = vpack.c.b16 %v758, %v754
    %v1059 = vpack.c.b16 %v759, %v755
    %v1060 = vpack.c.b16 %v764, %v760
    %v1061 = vpack.c.b16 %v765, %v761
    %v1062 = vpack.c.b16 %v766, %v762
    %v1063 = vpack.c.b16 %v767, %v763
    %v1064 = vpack.c.b16 %v772, %v768
    %v1065 = vpack.c.b16 %v773, %v769
    %v1066 = vpack.c.b16 %v774, %v770
    %v1067 = vpack.c.b16 %v775, %v771
    %v1068 = vpack.c.b16 %v780, %v776
    %v1069 = vpack.c.b16 %v781, %v777
    %v1070 = vpack.c.b16 %v782, %v778
    %v1071 = vpack.c.b16 %v783, %v779
    %v1072 = vpack.c.b16 %v788, %v784
    %v1073 = vpack.c.b16 %v789, %v785
    %v1074 = vpack.c.b16 %v790, %v786
    %v1075 = vpack.c.b16 %v791, %v787
    %v1076 = vpack.c.b16 %v796, %v792
    %v1077 = vpack.c.b16 %v797, %v793
    %v1078 = vpack.c.b16 %v798, %v794
    %v1079 = vpack.c.b16 %v799, %v795
    %v1080 = vpack.c.b16 %v804, %v800
    %v1081 = vpack.c.b16 %v805, %v801
    %v1082 = vpack.c.b16 %v806, %v802
    %v1083 = vpack.c.b16 %v807, %v803
    %v1084 = vpack.c.b16 %v812, %v808
    %v1085 = vpack.c.b16 %v813, %v809
    %v1086 = vpack.c.b16 %v814, %v810
    %v1087 = vpack.c.b16 %v815, %v811
    %v1088 = vpack.c.b16 %v820, %v816
    %v1089 = vpack.c.b16 %v821, %v817
    %v1090 = vpack.c.b16 %v822, %v818
    %v1091 = vpack.c.b16 %v823, %v819
    %v1092 = vpack.c.b16 %v828, %v824
    %v1093 = vpack.c.b16 %v829, %v825
    %v1094 = vpack.c.b16 %v830, %v826
    %v1095 = vpack.c.b16 %v831, %v827
    %v1096 = vpack.c.b16 %v836, %v832
    %v1097 = vpack.c.b16 %v837, %v833
    %v1098 = vpack.c.b16 %v838, %v834
    %v1099 = vpack.c.b16 %v839, %v835
    %v1100 = vpack.c.b16 %v844, %v840
    %v1101 = vpack.c.b16 %v845, %v841
    %v1102 = vpack.c.b16 %v846, %v842
    %v1103 = vpack.c.b16 %v847, %v843
    %v1104 = vpack.c.b16 %v852, %v848
    %v1105 = vpack.c.b16 %v853, %v849
    %v1106 = vpack.c.b16 %v854, %v850
    %v1107 = vpack.c.b16 %v855, %v851
    %v1108 = vpack.c.b16 %v860, %v856
    %v1109 = vpack.c.b16 %v861, %v857
    %v1110 = vpack.c.b16 %v862, %v858
    %v1111 = vpack.c.b16 %v863, %v859
    %v1112 = vpack.c.b16 %v868, %v864
    %v1113 = vpack.c.b16 %v869, %v865
    %v1114 = vpack.c.b16 %v870, %v866
    %v1115 = vpack.c.b16 %v871, %v867
    %v1116 = vpack.c.b16 %v876, %v872
    %v1117 = vpack.c.b16 %v877, %v873
    %v1118 = vpack.c.b16 %v878, %v874
    %v1119 = vpack.c.b16 %v879, %v875
    %v1120 = vpack.c.b16 %v884, %v880
    %v1121 = vpack.c.b16 %v885, %v881
    %v1122 = vpack.c.b16 %v886, %v882
    %v1123 = vpack.c.b16 %v887, %v883
    %v1124 = vpack.c.b16 %v892, %v888
    %v1125 = vpack.c.b16 %v893, %v889
    %v1126 = vpack.c.b16 %v894, %v890
    %v1127 = vpack.c.b16 %v895, %v891
    %v1128 = vpack.c.b16 %v900, %v896
    %v1129 = vpack.c.b16 %v901, %v897
    %v1130 = vpack.c.b16 %v902, %v898
    %v1131 = vpack.c.b16 %v903, %v899
    %v1132 = vpack.c.b16 %v908, %v904
    %v1133 = vpack.c.b16 %v909, %v905
    %v1134 = vpack.c.b16 %v910, %v906
    %v1135 = vpack.c.b16 %v911, %v907
    %v1136 = vpack.c.b16 %v916, %v912
    %v1137 = vpack.c.b16 %v917, %v913
    %v1138 = vpack.c.b16 %v918, %v914
    %v1139 = vpack.c.b16 %v919, %v915
    %v1140 = vpack.c.b16 %v924, %v920
    %v1141 = vpack.c.b16 %v925, %v921
    %v1142 = vpack.c.b16 %v926, %v922
    %v1143 = vpack.c.b16 %v927, %v923
    %v1144 = vpack.c.b16 %v932, %v928
    %v1145 = vpack.c.b16 %v933, %v929
    %v1146 = vpack.c.b16 %v934, %v930
    %v1147 = vpack.c.b16 %v935, %v931
    %v1148 = vpack.c.b16 %v940, %v936
    %v1149 = vpack.c.b16 %v941, %v937
    %v1150 = vpack.c.b16 %v942, %v938
    %v1151 = vpack.c.b16 %v943, %v939
    %v1152 = vpack.c.b16 %v948, %v944
    %v1153 = vpack.c.b16 %v949, %v945
    %v1154 = vpack.c.b16 %v950, %v946
    %v1155 = vpack.c.b16 %v951, %v947
    %v1156 = vpack.c.b16 %v956, %v952
    %v1157 = vpack.c.b16 %v957, %v953
    %v1158 = vpack.c.b16 %v958, %v954
    %v1159 = vpack.c.b16 %v959, %v955
    %v1160 = vpack.c.b16 %v964, %v960
    %v1161 = vpack.c.b16 %v965, %v961
    %v1162 = vpack.c.b16 %v966, %v962
    %v1163 = vpack.c.b16 %v967, %v963
    %vm1360 = vcmask 130048
    %v1362 = vsel %vm1360, %v373, 0
    %1364 = vmatprep.subr.bf16.mxu0 %v969
    %1365 = vmatpush1.bf16.msra.mxu0 %v968
    %1366 = vmatprep.subr.bf16.mxu0 %v973
    %1367 = vmatpush1.bf16.msra.mxu0 %v972
    %1368 = vmatprep.subr.bf16.mxu0 %v977
    %1369 = vmatpush1.bf16.msra.mxu0 %v976
    %1370 = vmatprep.subr.bf16.mxu0 %v981
    %1371 = vmatpush1.bf16.msra.mxu0 %v980
    %1372 = vmatprep.subr.bf16.mxu0 %v985
    %1373 = vmatpush1.bf16.msra.mxu0 %v984
    %1374 = vmatprep.subr.bf16.mxu0 %v989
    %1375 = vmatpush1.bf16.msra.mxu0 %v988
    %1376 = vmatprep.subr.bf16.mxu0 %v993
    %1377 = vmatpush1.bf16.msra.mxu0 %v992
    %1378 = vmatprep.subr.bf16.mxu0 %v997
    %1379 = vmatpush1.bf16.msra.mxu0 %v996
    %1380 = vmatprep.subr.bf16.mxu0 %v1001
    %1381 = vmatpush1.bf16.msra.mxu0 %v1000
    %1382 = vmatprep.subr.bf16.mxu0 %v1005
    %1383 = vmatpush1.bf16.msra.mxu0 %v1004
    %1384 = vmatprep.subr.bf16.mxu0 %v1009
    %1385 = vmatpush1.bf16.msra.mxu0 %v1008
    %1386 = vmatprep.subr.bf16.mxu0 %v1013
    %1387 = vmatpush1.bf16.msra.mxu0 %v1012
    %1388 = vmatprep.subr.bf16.mxu0 %v1017
    %1389 = vmatpush1.bf16.msra.mxu0 %v1016
    %1390 = vmatprep.subr.bf16.mxu0 %v1021
    %1391 = vmatpush1.bf16.msra.mxu0 %v1020
    %1392 = vmatprep.subr.bf16.mxu0 %v1025
    %1393 = vmatpush1.bf16.msra.mxu0 %v1024
    %1394 = vmatprep.subr.bf16.mxu0 %v1029
    %1395 = vmatpush1.bf16.msra.mxu0 %v1028
    %1396 = vmatprep.mubr.bf16.mxu0 %v368
    %1397 = vmatmul.mubr.bf16.gmra.mrb[0].mxu0 %v367
    %v1398 = vpop.f32.mrb[0].mxu0
    %v1399 = vadd.f32 %v328, %v1398
    %v1400 = vpop.f32.mrb[0].mxu0
    %v1401 = vadd.f32 %v332, %v1400
    %v1402 = vpop.f32.mrb[0].mxu0
    %v1403 = vadd.f32 %v328, %v1402
    %v1404 = vpop.f32.mrb[0].mxu0
    %v1405 = vadd.f32 %v332, %v1404
    %1406 = vdwg.mxu0
    %1407 = vmatprep.subr.bf16.mxu0 %v1033
    %1408 = vmatpush1.bf16.msra.mxu0 %v1032
    %1409 = vmatprep.subr.bf16.mxu0 %v1037
    %1410 = vmatpush1.bf16.msra.mxu0 %v1036
    %1411 = vmatprep.subr.bf16.mxu0 %v1041
    %1412 = vmatpush1.bf16.msra.mxu0 %v1040
    %1413 = vmatprep.subr.bf16.mxu0 %v1045
    %1414 = vmatpush1.bf16.msra.mxu0 %v1044
    %1415 = vmatprep.subr.bf16.mxu0 %v1049
    %1416 = vmatpush1.bf16.msra.mxu0 %v1048
    %1417 = vmatprep.subr.bf16.mxu0 %v1053
    %1418 = vmatpush1.bf16.msra.mxu0 %v1052
    %1419 = vmatprep.subr.bf16.mxu0 %v1057
    %1420 = vmatpush1.bf16.msra.mxu0 %v1056
    %1421 = vmatprep.subr.bf16.mxu0 %v1061
    %1422 = vmatpush1.bf16.msra.mxu0 %v1060
    %1423 = vmatprep.subr.bf16.mxu0 %v1065
    %1424 = vmatpush1.bf16.msra.mxu0 %v1064
    %1425 = vmatprep.subr.bf16.mxu0 %v1069
    %1426 = vmatpush1.bf16.msra.mxu0 %v1068
    %1427 = vmatprep.subr.bf16.mxu0 %v1073
    %1428 = vmatpush1.bf16.msra.mxu0 %v1072
    %1429 = vmatprep.subr.bf16.mxu0 %v1077
    %1430 = vmatpush1.bf16.msra.mxu0 %v1076
    %1431 = vmatprep.subr.bf16.mxu0 %v1081
    %1432 = vmatpush1.bf16.msra.mxu0 %v1080
    %1433 = vmatprep.subr.bf16.mxu0 %v1085
    %1434 = vmatpush1.bf16.msra.mxu0 %v1084
    %1435 = vmatprep.subr.bf16.mxu0 %v1089
    %1436 = vmatpush1.bf16.msra.mxu0 %v1088
    %1437 = vmatprep.subr.bf16.mxu0 %v1093
    %1438 = vmatpush1.bf16.msra.mxu0 %v1092
    %1439 = vmatprep.mubr.bf16.mxu0 %v370
    %1440 = vmatmul.mubr.bf16.gmra.mrb[0].mxu0 %v369
    %v1441 = vpop.f32.mrb[0].mxu0
    %v1442 = vadd.f32 %v1399, %v1441
    %v1443 = vpop.f32.mrb[0].mxu0
    %v1444 = vadd.f32 %v1401, %v1443
    %v1445 = vpop.f32.mrb[0].mxu0
    %v1446 = vadd.f32 %v1403, %v1445
    %v1447 = vpop.f32.mrb[0].mxu0
    %v1448 = vadd.f32 %v1405, %v1447
    %1449 = vdwg.mxu0
    %1450 = vmatprep.subr.bf16.mxu0 %v1097
    %1451 = vmatpush1.bf16.msra.mxu0 %v1096
    %1452 = vmatprep.subr.bf16.mxu0 %v1101
    %1453 = vmatpush1.bf16.msra.mxu0 %v1100
    %1454 = vmatprep.subr.bf16.mxu0 %v1105
    %1455 = vmatpush1.bf16.msra.mxu0 %v1104
    %1456 = vmatprep.subr.bf16.mxu0 %v1109
    %1457 = vmatpush1.bf16.msra.mxu0 %v1108
    %1458 = vmatprep.subr.bf16.mxu0 %v1113
    %1459 = vmatpush1.bf16.msra.mxu0 %v1112
    %1460 = vmatprep.subr.bf16.mxu0 %v1117
    %1461 = vmatpush1.bf16.msra.mxu0 %v1116
    %1462 = vmatprep.subr.bf16.mxu0 %v1121
    %1463 = vmatpush1.bf16.msra.mxu0 %v1120
    %1464 = vmatprep.subr.bf16.mxu0 %v1125
    %1465 = vmatpush1.bf16.msra.mxu0 %v1124
    %1466 = vmatprep.subr.bf16.mxu0 %v1129
    %1467 = vmatpush1.bf16.msra.mxu0 %v1128
    %1468 = vmatprep.subr.bf16.mxu0 %v1133
    %1469 = vmatpush1.bf16.msra.mxu0 %v1132
    %1470 = vmatprep.subr.bf16.mxu0 %v1137
    %1471 = vmatpush1.bf16.msra.mxu0 %v1136
    %1472 = vmatprep.subr.bf16.mxu0 %v1141
    %1473 = vmatpush1.bf16.msra.mxu0 %v1140
    %1474 = vmatprep.subr.bf16.mxu0 %v1145
    %1475 = vmatpush1.bf16.msra.mxu0 %v1144
    %1476 = vmatprep.subr.bf16.mxu0 %v1149
    %1477 = vmatpush1.bf16.msra.mxu0 %v1148
    %1478 = vmatprep.subr.bf16.mxu0 %v1153
    %1479 = vmatpush1.bf16.msra.mxu0 %v1152
    %1480 = vmatprep.subr.bf16.mxu0 %v1157
    %1481 = vmatpush1.bf16.msra.mxu0 %v1156
    %1482 = vmatprep.mubr.bf16.mxu0 %v372
    %1483 = vmatmul.mubr.bf16.gmra.mrb[0].mxu0 %v371
    %v1484 = vpop.f32.mrb[0].mxu0
    %v1485 = vadd.f32 %v1442, %v1484
    %v1486 = vpop.f32.mrb[0].mxu0
    %v1487 = vadd.f32 %v1444, %v1486
    %v1488 = vpop.f32.mrb[0].mxu0
    %v1489 = vadd.f32 %v1446, %v1488
    %v1490 = vpop.f32.mrb[0].mxu0
    %v1491 = vadd.f32 %v1448, %v1490
    %1492 = vdwg.mxu0
    %1493 = vmatprep.subr.bf16.mxu0 %v1161
    %1494 = vmatpush1.bf16.msra.mxu0 %v1160
    %1495 = vmatprep.subr.bf16.mxu0 0
    %1496 = vmatpush1.bf16.msra.mxu0 0
    %1497 = vmatprep.subr.bf16.mxu0 0
    %1498 = vmatpush1.bf16.msra.mxu0 0
    %1499 = vmatprep.subr.bf16.mxu0 0
    %1500 = vmatpush1.bf16.msra.mxu0 0
    %1501 = vmatprep.subr.bf16.mxu0 0
    %1502 = vmatpush1.bf16.msra.mxu0 0
    %1503 = vmatprep.subr.bf16.mxu0 0
    %1504 = vmatpush1.bf16.msra.mxu0 0
    %1505 = vmatprep.subr.bf16.mxu0 0
    %1506 = vmatpush1.bf16.msra.mxu0 0
    %1507 = vmatprep.subr.bf16.mxu0 0
    %1508 = vmatpush1.bf16.msra.mxu0 0
    %1509 = vmatprep.subr.bf16.mxu0 0
    %1510 = vmatpush1.bf16.msra.mxu0 0
    %1511 = vmatprep.subr.bf16.mxu0 0
    %1512 = vmatpush1.bf16.msra.mxu0 0
    %1513 = vmatprep.subr.bf16.mxu0 0
    %1514 = vmatpush1.bf16.msra.mxu0 0
    %1515 = vmatprep.subr.bf16.mxu0 0
    %1516 = vmatpush1.bf16.msra.mxu0 0
    %1517 = vmatprep.subr.bf16.mxu0 0
    %1518 = vmatpush1.bf16.msra.mxu0 0
    %1519 = vmatprep.subr.bf16.mxu0 0
    %1520 = vmatpush1.bf16.msra.mxu0 0
    %1521 = vmatprep.subr.bf16.mxu0 0
    %1522 = vmatpush1.bf16.msra.mxu0 0
    %1523 = vmatprep.subr.bf16.mxu0 0
    %1524 = vmatpush1.bf16.msra.mxu0 0
    %1525 = vmatprep.mubr.bf16.mxu0 0
    %1526 = vmatmul.mubr.bf16.gmra.mrb[0].mxu0 %v1362
    %v1527 = vpop.f32.mrb[0].mxu0
    %v1528 = vadd.f32 %v1485, %v1527
    %v1529 = vpop.f32.mrb[0].mxu0
    %v1530 = vadd.f32 %v1487, %v1529
    %v1531 = vpop.f32.mrb[0].mxu0
    %v1532 = vadd.f32 %v1489, %v1531
    %v1533 = vpop.f32.mrb[0].mxu0
    %v1534 = vadd.f32 %v1491, %v1533
    %1535 = vdwg.mxu0
    %1536 = vmatprep.subr.bf16.mxu0 %v971
    %1537 = vmatpush1.bf16.msra.mxu0 %v970
    %1538 = vmatprep.subr.bf16.mxu0 %v975
    %1539 = vmatpush1.bf16.msra.mxu0 %v974
    %1540 = vmatprep.subr.bf16.mxu0 %v979
    %1541 = vmatpush1.bf16.msra.mxu0 %v978
    %1542 = vmatprep.subr.bf16.mxu0 %v983
    %1543 = vmatpush1.bf16.msra.mxu0 %v982
    %1544 = vmatprep.subr.bf16.mxu0 %v987
    %1545 = vmatpush1.bf16.msra.mxu0 %v986
    %1546 = vmatprep.subr.bf16.mxu0 %v991
    %1547 = vmatpush1.bf16.msra.mxu0 %v990
    %1548 = vmatprep.subr.bf16.mxu0 %v995
    %1549 = vmatpush1.bf16.msra.mxu0 %v994
    %1550 = vmatprep.subr.bf16.mxu0 %v999
    %1551 = vmatpush1.bf16.msra.mxu0 %v998
    %1552 = vmatprep.subr.bf16.mxu0 %v1003
    %1553 = vmatpush1.bf16.msra.mxu0 %v1002
    %1554 = vmatprep.subr.bf16.mxu0 %v1007
    %1555 = vmatpush1.bf16.msra.mxu0 %v1006
    %1556 = vmatprep.subr.bf16.mxu0 %v1011
    %1557 = vmatpush1.bf16.msra.mxu0 %v1010
    %1558 = vmatprep.subr.bf16.mxu0 %v1015
    %1559 = vmatpush1.bf16.msra.mxu0 %v1014
    %1560 = vmatprep.subr.bf16.mxu0 %v1019
    %1561 = vmatpush1.bf16.msra.mxu0 %v1018
    %1562 = vmatprep.subr.bf16.mxu0 %v1023
    %1563 = vmatpush1.bf16.msra.mxu0 %v1022
    %1564 = vmatprep.subr.bf16.mxu0 %v1027
    %1565 = vmatpush1.bf16.msra.mxu0 %v1026
    %1566 = vmatprep.subr.bf16.mxu0 %v1031
    %1567 = vmatpush1.bf16.msra.mxu0 %v1030
    %1568 = vmatprep.mubr.bf16.mxu0 %v368
    %1569 = vmatmul.mubr.bf16.gmra.mrb[0].mxu0 %v367
    %v1570 = vpop.f32.mrb[0].mxu0
    %v1571 = vadd.f32 %v336, %v1570
    %v1572 = vpop.f32.mrb[0].mxu0
    %v1573 = vadd.f32 %v340, %v1572
    %v1574 = vpop.f32.mrb[0].mxu0
    %v1575 = vadd.f32 %v336, %v1574
    %v1576 = vpop.f32.mrb[0].mxu0
    %v1577 = vadd.f32 %v340, %v1576
    %1578 = vdwg.mxu0
    %1579 = vmatprep.subr.bf16.mxu0 %v1035
    %1580 = vmatpush1.bf16.msra.mxu0 %v1034
    %1581 = vmatprep.subr.bf16.mxu0 %v1039
    %1582 = vmatpush1.bf16.msra.mxu0 %v1038
    %1583 = vmatprep.subr.bf16.mxu0 %v1043
    %1584 = vmatpush1.bf16.msra.mxu0 %v1042
    %1585 = vmatprep.subr.bf16.mxu0 %v1047
    %1586 = vmatpush1.bf16.msra.mxu0 %v1046
    %1587 = vmatprep.subr.bf16.mxu0 %v1051
    %1588 = vmatpush1.bf16.msra.mxu0 %v1050
    %1589 = vmatprep.subr.bf16.mxu0 %v1055
    %1590 = vmatpush1.bf16.msra.mxu0 %v1054
    %1591 = vmatprep.subr.bf16.mxu0 %v1059
    %1592 = vmatpush1.bf16.msra.mxu0 %v1058
    %1593 = vmatprep.subr.bf16.mxu0 %v1063
    %1594 = vmatpush1.bf16.msra.mxu0 %v1062
    %1595 = vmatprep.subr.bf16.mxu0 %v1067
    %1596 = vmatpush1.bf16.msra.mxu0 %v1066
    %1597 = vmatprep.subr.bf16.mxu0 %v1071
    %1598 = vmatpush1.bf16.msra.mxu0 %v1070
    %1599 = vmatprep.subr.bf16.mxu0 %v1075
    %1600 = vmatpush1.bf16.msra.mxu0 %v1074
    %1601 = vmatprep.subr.bf16.mxu0 %v1079
    %1602 = vmatpush1.bf16.msra.mxu0 %v1078
    %1603 = vmatprep.subr.bf16.mxu0 %v1083
    %1604 = vmatpush1.bf16.msra.mxu0 %v1082
    %1605 = vmatprep.subr.bf16.mxu0 %v1087
    %1606 = vmatpush1.bf16.msra.mxu0 %v1086
    %1607 = vmatprep.subr.bf16.mxu0 %v1091
    %1608 = vmatpush1.bf16.msra.mxu0 %v1090
    %1609 = vmatprep.subr.bf16.mxu0 %v1095
    %1610 = vmatpush1.bf16.msra.mxu0 %v1094
    %1611 = vmatprep.mubr.bf16.mxu0 %v370
    %1612 = vmatmul.mubr.bf16.gmra.mrb[0].mxu0 %v369
    %v1613 = vpop.f32.mrb[0].mxu0
    %v1614 = vadd.f32 %v1571, %v1613
    %v1615 = vpop.f32.mrb[0].mxu0
    %v1616 = vadd.f32 %v1573, %v1615
    %v1617 = vpop.f32.mrb[0].mxu0
    %v1618 = vadd.f32 %v1575, %v1617
    %v1619 = vpop.f32.mrb[0].mxu0
    %v1620 = vadd.f32 %v1577, %v1619
    %1621 = vdwg.mxu0
    %1622 = vmatprep.subr.bf16.mxu0 %v1099
    %1623 = vmatpush1.bf16.msra.mxu0 %v1098
    %1624 = vmatprep.subr.bf16.mxu0 %v1103
    %1625 = vmatpush1.bf16.msra.mxu0 %v1102
    %1626 = vmatprep.subr.bf16.mxu0 %v1107
    %1627 = vmatpush1.bf16.msra.mxu0 %v1106
    %1628 = vmatprep.subr.bf16.mxu0 %v1111
    %1629 = vmatpush1.bf16.msra.mxu0 %v1110
    %1630 = vmatprep.subr.bf16.mxu0 %v1115
    %1631 = vmatpush1.bf16.msra.mxu0 %v1114
    %1632 = vmatprep.subr.bf16.mxu0 %v1119
    %1633 = vmatpush1.bf16.msra.mxu0 %v1118
    %1634 = vmatprep.subr.bf16.mxu0 %v1123
    %1635 = vmatpush1.bf16.msra.mxu0 %v1122
    %1636 = vmatprep.subr.bf16.mxu0 %v1127
    %1637 = vmatpush1.bf16.msra.mxu0 %v1126
    %1638 = vmatprep.subr.bf16.mxu0 %v1131
    %1639 = vmatpush1.bf16.msra.mxu0 %v1130
    %1640 = vmatprep.subr.bf16.mxu0 %v1135
    %1641 = vmatpush1.bf16.msra.mxu0 %v1134
    %1642 = vmatprep.subr.bf16.mxu0 %v1139
    %1643 = vmatpush1.bf16.msra.mxu0 %v1138
    %1644 = vmatprep.subr.bf16.mxu0 %v1143
    %1645 = vmatpush1.bf16.msra.mxu0 %v1142
    %1646 = vmatprep.subr.bf16.mxu0 %v1147
    %1647 = vmatpush1.bf16.msra.mxu0 %v1146
    %1648 = vmatprep.subr.bf16.mxu0 %v1151
    %1649 = vmatpush1.bf16.msra.mxu0 %v1150
    %1650 = vmatprep.subr.bf16.mxu0 %v1155
    %1651 = vmatpush1.bf16.msra.mxu0 %v1154
    %1652 = vmatprep.subr.bf16.mxu0 %v1159
    %1653 = vmatpush1.bf16.msra.mxu0 %v1158
    %1654 = vmatprep.mubr.bf16.mxu0 %v372
    %1655 = vmatmul.mubr.bf16.gmra.mrb[0].mxu0 %v371
    %v1656 = vpop.f32.mrb[0].mxu0
    %v1657 = vadd.f32 %v1614, %v1656
    %v1658 = vpop.f32.mrb[0].mxu0
    %v1659 = vadd.f32 %v1616, %v1658
    %v1660 = vpop.f32.mrb[0].mxu0
    %v1661 = vadd.f32 %v1618, %v1660
    %v1662 = vpop.f32.mrb[0].mxu0
    %v1663 = vadd.f32 %v1620, %v1662
    %1664 = vdwg.mxu0
    %1665 = vmatprep.subr.bf16.mxu0 %v1163
    %1666 = vmatpush1.bf16.msra.mxu0 %v1162
    %1667 = vmatprep.subr.bf16.mxu0 0
    %1668 = vmatpush1.bf16.msra.mxu0 0
    %1669 = vmatprep.subr.bf16.mxu0 0
    %1670 = vmatpush1.bf16.msra.mxu0 0
    %1671 = vmatprep.subr.bf16.mxu0 0
    %1672 = vmatpush1.bf16.msra.mxu0 0
    %1673 = vmatprep.subr.bf16.mxu0 0
    %1674 = vmatpush1.bf16.msra.mxu0 0
    %1675 = vmatprep.subr.bf16.mxu0 0
    %1676 = vmatpush1.bf16.msra.mxu0 0
    %1677 = vmatprep.subr.bf16.mxu0 0
    %1678 = vmatpush1.bf16.msra.mxu0 0
    %1679 = vmatprep.subr.bf16.mxu0 0
    %1680 = vmatpush1.bf16.msra.mxu0 0
    %1681 = vmatprep.subr.bf16.mxu0 0
    %1682 = vmatpush1.bf16.msra.mxu0 0
    %1683 = vmatprep.subr.bf16.mxu0 0
    %1684 = vmatpush1.bf16.msra.mxu0 0
    %1685 = vmatprep.subr.bf16.mxu0 0
    %1686 = vmatpush1.bf16.msra.mxu0 0
    %1687 = vmatprep.subr.bf16.mxu0 0
    %1688 = vmatpush1.bf16.msra.mxu0 0
    %1689 = vmatprep.subr.bf16.mxu0 0
    %1690 = vmatpush1.bf16.msra.mxu0 0
    %1691 = vmatprep.subr.bf16.mxu0 0
    %1692 = vmatpush1.bf16.msra.mxu0 0
    %1693 = vmatprep.subr.bf16.mxu0 0
    %1694 = vmatpush1.bf16.msra.mxu0 0
    %1695 = vmatprep.subr.bf16.mxu0 0
    %1696 = vmatpush1.bf16.msra.mxu0 0
    %1697 = vmatprep.mubr.bf16.mxu0 0
    %1698 = vmatmul.mubr.bf16.gmra.mrb[0].mxu0 %v1362
    %v1699 = vpop.f32.mrb[0].mxu0
    %v1700 = vadd.f32 %v1657, %v1699
    %v1701 = vpop.f32.mrb[0].mxu0
    %v1702 = vadd.f32 %v1659, %v1701
    %v1703 = vpop.f32.mrb[0].mxu0
    %v1704 = vadd.f32 %v1661, %v1703
    %v1705 = vpop.f32.mrb[0].mxu0
    %v1706 = vadd.f32 %v1663, %v1705
    %1707 = vdwg.mxu0
    %v1708 = vmax.f32 %v1528, 0.0
    %v1709 = vmax.f32 %v1530, 0.0
    %v1710 = vmax.f32 %v1700, 0.0
    %v1711 = vmax.f32 %v1702, 0.0
    %v1712 = vmax.f32 %v1532, 0.0
    %v1713 = vmax.f32 %v1534, 0.0
    %v1714 = vmax.f32 %v1704, 0.0
    %v1715 = vmax.f32 %v1706, 0.0
    %v1716 = vld [vmem:[#allocation5] sm:$0xff]
    %v1717 = vld [vmem:[#allocation5 + $0x8] sm:$0xff]
    %v1718 = vld [vmem:[#allocation5 + $0x10] sm:$0xff]
    %v1719 = vld [vmem:[#allocation5 + $0x18] sm:$0xff]
    %v1720 = vld [vmem:[#allocation5 + $0x20] sm:$0xff]
    %v1721 = vld [vmem:[#allocation5 + $0x28] sm:$0xff]
    %v1722 = vld [vmem:[#allocation5 + $0x30] sm:$0xff]
    %v1723 = vld [vmem:[#allocation5 + $0x38] sm:$0xff]
    %vm1724 = vcmp.ge.u32.totalorder %v1716, 1288490189
    %vm1725 = vcmp.ge.u32.totalorder %v1717, 1288490189
    %vm1726 = vcmp.ge.u32.totalorder %v1718, 1288490189
    %vm1727 = vcmp.ge.u32.totalorder %v1719, 1288490189
    %vm1728 = vcmp.ge.u32.totalorder %v1720, 1288490189
    %vm1729 = vcmp.ge.u32.totalorder %v1721, 1288490189
    %vm1730 = vcmp.ge.u32.totalorder %v1722, 1288490189
    %vm1731 = vcmp.ge.u32.totalorder %v1723, 1288490189
    %v1732 = vsel %vm1724, %v1708, 0.0
    %v1733 = vsel %vm1725, %v1709, 0.0
    %v1734 = vsel %vm1726, %v1710, 0.0
    %v1735 = vsel %vm1727, %v1711, 0.0
    %v1736 = vsel %vm1728, %v1712, 0.0
    %v1737 = vsel %vm1729, %v1713, 0.0
    %v1738 = vsel %vm1730, %v1714, 0.0
    %v1739 = vsel %vm1731, %v1715, 0.0
    %v1740 = vpack.c.bf16 %v1736, %v1732
    %v1741 = vpack.c.bf16 %v1737, %v1733
    %v1742 = vpack.c.bf16 %v1738, %v1734
    %v1743 = vpack.c.bf16 %v1739, %v1735
    %v1744 = vld [vmem:[#allocation8] sm:$0xf]
    %v1745 = vld [vmem:[#allocation8 + $0x4] sm:$0xf]
    %v1746 = vld [vmem:[#allocation8 + $0x8] sm:$0xf]
    %v1747 = vld [vmem:[#allocation8 + $0xc] sm:$0xf]
    %v1748 = vld [vmem:[#allocation8 + $0x10] sm:$0xf]
    %v1749 = vld [vmem:[#allocation8 + $0x14] sm:$0xf]
    %v1750 = vld [vmem:[#allocation8 + $0x18] sm:$0xf]
    %v1751 = vld [vmem:[#allocation8 + $0x1c] sm:$0xf]
    %v1752 = vld [vmem:[#allocation8 + $0x20] sm:$0xf]
    %v1753 = vld [vmem:[#allocation8 + $0x24] sm:$0xf]
    %v1754 = vld [vmem:[#allocation8 + $0x28] sm:$0xf]
    %v1755 = vld [vmem:[#allocation8 + $0x2c] sm:$0xf]
    %v1756 = vld [vmem:[#allocation8 + $0x30] sm:$0xf]
    %v1757 = vld [vmem:[#allocation8 + $0x34] sm:$0xf]
    %v1758 = vld [vmem:[#allocation8 + $0x38] sm:$0xf]
    %v1759 = vld [vmem:[#allocation8 + $0x3c] sm:$0xf]
    %v1760 = vld [vmem:[#allocation8 + $0x40] sm:$0xf]
    %v1761 = vld [vmem:[#allocation8 + $0x44] sm:$0xf]
    %v1762 = vld [vmem:[#allocation8 + $0x48] sm:$0xf]
    %v1763 = vld [vmem:[#allocation8 + $0x4c] sm:$0xf]
    %v1764 = vld [vmem:[#allocation8 + $0x50] sm:$0xf]
    %v1765 = vld [vmem:[#allocation8 + $0x54] sm:$0xf]
    %v1766 = vld [vmem:[#allocation8 + $0x58] sm:$0xf]
    %v1767 = vld [vmem:[#allocation8 + $0x5c] sm:$0xf]
    %v1768 = vld [vmem:[#allocation8 + $0x60] sm:$0xf]
    %v1769 = vld [vmem:[#allocation8 + $0x64] sm:$0xf]
    %v1770 = vld [vmem:[#allocation8 + $0x68] sm:$0xf]
    %v1771 = vld [vmem:[#allocation8 + $0x6c] sm:$0xf]
    %v1772 = vld [vmem:[#allocation8 + $0x70] sm:$0xf]
    %v1773 = vld [vmem:[#allocation8 + $0x74] sm:$0xf]
    %v1774 = vld [vmem:[#allocation8 + $0x78] sm:$0xf]
    %v1775 = vld [vmem:[#allocation8 + $0x7c] sm:$0xf]
    %v1776 = vld [vmem:[#allocation8 + $0x80] sm:$0xf]
    %v1777 = vld [vmem:[#allocation8 + $0x84] sm:$0xf]
    %v1778 = vld [vmem:[#allocation8 + $0x88] sm:$0xf]
    %v1779 = vld [vmem:[#allocation8 + $0x8c] sm:$0xf]
    %v1780 = vld [vmem:[#allocation8 + $0x90] sm:$0xf]
    %v1781 = vld [vmem:[#allocation8 + $0x94] sm:$0xf]
    %v1782 = vld [vmem:[#allocation8 + $0x98] sm:$0xf]
    %v1783 = vld [vmem:[#allocation8 + $0x9c] sm:$0xf]
    %v1784 = vld [vmem:[#allocation8 + $0xa0] sm:$0xf]
    %v1785 = vld [vmem:[#allocation8 + $0xa4] sm:$0xf]
    %v1786 = vld [vmem:[#allocation8 + $0xa8] sm:$0xf]
    %v1787 = vld [vmem:[#allocation8 + $0xac] sm:$0xf]
    %v1788 = vld [vmem:[#allocation8 + $0xb0] sm:$0xf]
    %v1789 = vld [vmem:[#allocation8 + $0xb4] sm:$0xf]
    %v1790 = vld [vmem:[#allocation8 + $0xb8] sm:$0xf]
    %v1791 = vld [vmem:[#allocation8 + $0xbc] sm:$0xf]
    %v1792 = vld [vmem:[#allocation8 + $0xc0] sm:$0xf]
    %v1793 = vld [vmem:[#allocation8 + $0xc4] sm:$0xf]
    %v1794 = vld [vmem:[#allocation8 + $0xc8] sm:$0xf]
    %v1795 = vld [vmem:[#allocation8 + $0xcc] sm:$0xf]
    %v1796 = vld [vmem:[#allocation8 + $0xd0] sm:$0xf]
    %v1797 = vld [vmem:[#allocation8 + $0xd4] sm:$0xf]
    %v1798 = vld [vmem:[#allocation8 + $0xd8] sm:$0xf]
    %v1799 = vld [vmem:[#allocation8 + $0xdc] sm:$0xf]
    %v1800 = vld [vmem:[#allocation8 + $0xe0] sm:$0xf]
    %v1801 = vld [vmem:[#allocation8 + $0xe4] sm:$0xf]
    %v1802 = vld [vmem:[#allocation8 + $0xe8] sm:$0xf]
    %v1803 = vld [vmem:[#allocation8 + $0xec] sm:$0xf]
    %v1804 = vld [vmem:[#allocation8 + $0xf0] sm:$0xf]
    %v1805 = vld [vmem:[#allocation8 + $0xf4] sm:$0xf]
    %v1806 = vld [vmem:[#allocation8 + $0xf8] sm:$0xf]
    %v1807 = vld [vmem:[#allocation8 + $0xfc] sm:$0xf]
    %v1808 = vld [vmem:[%s5] sm:$0x1]
    %v1810 = vlaneseq
    %v1811 = vshrl.u32 %v1810, 7
    %v1812 = vsub.s32 0, %v1811
    %v1813 = vrot.slane %v1808, %v1812
    %v1879 = vunpack.c.l.b16 %v1744
    %v1880 = vunpack.c.l.b16 %v1745
    %v1881 = vunpack.c.l.b16 %v1746
    %v1882 = vunpack.c.l.b16 %v1747
    %v1883 = vunpack.c.l.b16 %v1748
    %v1884 = vunpack.c.l.b16 %v1749
    %v1885 = vunpack.c.l.b16 %v1750
    %v1886 = vunpack.c.l.b16 %v1751
    %v1887 = vunpack.c.l.b16 %v1752
    %v1888 = vunpack.c.l.b16 %v1753
    %v1889 = vunpack.c.l.b16 %v1754
    %v1890 = vunpack.c.l.b16 %v1755
    %v1891 = vunpack.c.l.b16 %v1756
    %v1892 = vunpack.c.l.b16 %v1757
    %v1893 = vunpack.c.l.b16 %v1758
    %v1894 = vunpack.c.l.b16 %v1759
    %v1895 = vunpack.c.l.b16 %v1760
    %v1896 = vunpack.c.l.b16 %v1761
    %v1897 = vunpack.c.l.b16 %v1762
    %v1898 = vunpack.c.l.b16 %v1763
    %v1899 = vunpack.c.l.b16 %v1764
    %v1900 = vunpack.c.l.b16 %v1765
    %v1901 = vunpack.c.l.b16 %v1766
    %v1902 = vunpack.c.l.b16 %v1767
    %v1903 = vunpack.c.l.b16 %v1768
    %v1904 = vunpack.c.l.b16 %v1769
    %v1905 = vunpack.c.l.b16 %v1770
    %v1906 = vunpack.c.l.b16 %v1771
    %v1907 = vunpack.c.l.b16 %v1772
    %v1908 = vunpack.c.l.b16 %v1773
    %v1909 = vunpack.c.l.b16 %v1774
    %v1910 = vunpack.c.l.b16 %v1775
    %v1911 = vunpack.c.l.b16 %v1776
    %v1912 = vunpack.c.l.b16 %v1777
    %v1913 = vunpack.c.l.b16 %v1778
    %v1914 = vunpack.c.l.b16 %v1779
    %v1915 = vunpack.c.l.b16 %v1780
    %v1916 = vunpack.c.l.b16 %v1781
    %v1917 = vunpack.c.l.b16 %v1782
    %v1918 = vunpack.c.l.b16 %v1783
    %v1919 = vunpack.c.l.b16 %v1784
    %v1920 = vunpack.c.l.b16 %v1785
    %v1921 = vunpack.c.l.b16 %v1786
    %v1922 = vunpack.c.l.b16 %v1787
    %v1923 = vunpack.c.l.b16 %v1788
    %v1924 = vunpack.c.l.b16 %v1789
    %v1925 = vunpack.c.l.b16 %v1790
    %v1926 = vunpack.c.l.b16 %v1791
    %v1927 = vunpack.c.l.b16 %v1792
    %v1928 = vunpack.c.l.b16 %v1793
    %v1929 = vunpack.c.l.b16 %v1794
    %v1930 = vunpack.c.l.b16 %v1795
    %v1931 = vunpack.c.l.b16 %v1796
    %v1932 = vunpack.c.l.b16 %v1797
    %v1933 = vunpack.c.l.b16 %v1798
    %v1934 = vunpack.c.l.b16 %v1799
    %v1935 = vunpack.c.l.b16 %v1800
    %v1936 = vunpack.c.l.b16 %v1801
    %v1937 = vunpack.c.l.b16 %v1802
    %v1938 = vunpack.c.l.b16 %v1803
    %v1939 = vunpack.c.l.b16 %v1804
    %v1940 = vunpack.c.l.b16 %v1805
    %v1941 = vunpack.c.l.b16 %v1806
    %v1942 = vunpack.c.l.b16 %v1807
    %v1943 = vpack.c.b16 %v1880, %v1879
    %v1944 = vpack.c.b16 %v1882, %v1881
    %v1945 = vpack.c.b16 %v1884, %v1883
    %v1946 = vpack.c.b16 %v1886, %v1885
    %v1947 = vpack.c.b16 %v1888, %v1887
    %v1948 = vpack.c.b16 %v1890, %v1889
    %v1949 = vpack.c.b16 %v1892, %v1891
    %v1950 = vpack.c.b16 %v1894, %v1893
    %v1951 = vpack.c.b16 %v1896, %v1895
    %v1952 = vpack.c.b16 %v1898, %v1897
    %v1953 = vpack.c.b16 %v1900, %v1899
    %v1954 = vpack.c.b16 %v1902, %v1901
    %v1955 = vpack.c.b16 %v1904, %v1903
    %v1956 = vpack.c.b16 %v1906, %v1905
    %v1957 = vpack.c.b16 %v1908, %v1907
    %v1958 = vpack.c.b16 %v1910, %v1909
    %v1959 = vpack.c.b16 %v1912, %v1911
    %v1960 = vpack.c.b16 %v1914, %v1913
    %v1961 = vpack.c.b16 %v1916, %v1915
    %v1962 = vpack.c.b16 %v1918, %v1917
    %v1963 = vpack.c.b16 %v1920, %v1919
    %v1964 = vpack.c.b16 %v1922, %v1921
    %v1965 = vpack.c.b16 %v1924, %v1923
    %v1966 = vpack.c.b16 %v1926, %v1925
    %v1967 = vpack.c.b16 %v1928, %v1927
    %v1968 = vpack.c.b16 %v1930, %v1929
    %v1969 = vpack.c.b16 %v1932, %v1931
    %v1970 = vpack.c.b16 %v1934, %v1933
    %v1971 = vpack.c.b16 %v1936, %v1935
    %v1972 = vpack.c.b16 %v1938, %v1937
    %v1973 = vpack.c.b16 %v1940, %v1939
    %v1974 = vpack.c.b16 %v1942, %v1941
    %2007 = vmatprep.subr.bf16.mxu0 0
    %2008 = vmatpush1.bf16.msra.mxu0 %v1943
    %2009 = vmatprep.subr.bf16.mxu0 0
    %2010 = vmatpush1.bf16.msra.mxu0 %v1944
    %2011 = vmatprep.subr.bf16.mxu0 0
    %2012 = vmatpush1.bf16.msra.mxu0 %v1945
    %2013 = vmatprep.subr.bf16.mxu0 0
    %2014 = vmatpush1.bf16.msra.mxu0 %v1946
    %2015 = vmatprep.subr.bf16.mxu0 0
    %2016 = vmatpush1.bf16.msra.mxu0 %v1947
    %2017 = vmatprep.subr.bf16.mxu0 0
    %2018 = vmatpush1.bf16.msra.mxu0 %v1948
    %2019 = vmatprep.subr.bf16.mxu0 0
    %2020 = vmatpush1.bf16.msra.mxu0 %v1949
    %2021 = vmatprep.subr.bf16.mxu0 0
    %2022 = vmatpush1.bf16.msra.mxu0 %v1950
    %2023 = vmatprep.subr.bf16.mxu0 0
    %2024 = vmatpush1.bf16.msra.mxu0 %v1951
    %2025 = vmatprep.subr.bf16.mxu0 0
    %2026 = vmatpush1.bf16.msra.mxu0 %v1952
    %2027 = vmatprep.subr.bf16.mxu0 0
    %2028 = vmatpush1.bf16.msra.mxu0 %v1953
    %2029 = vmatprep.subr.bf16.mxu0 0
    %2030 = vmatpush1.bf16.msra.mxu0 %v1954
    %2031 = vmatprep.subr.bf16.mxu0 0
    %2032 = vmatpush1.bf16.msra.mxu0 %v1955
    %2033 = vmatprep.subr.bf16.mxu0 0
    %2034 = vmatpush1.bf16.msra.mxu0 %v1956
    %2035 = vmatprep.subr.bf16.mxu0 0
    %2036 = vmatpush1.bf16.msra.mxu0 %v1957
    %2037 = vmatprep.subr.bf16.mxu0 0
    %2038 = vmatpush1.bf16.msra.mxu0 %v1958
    %2039 = vmatprep.mubr.bf16.mxu0 %v1741
    %2040 = vmatmul.mubr.bf16.gmra.mrb[0].mxu0 %v1740
    %v2041 = vpop.f32.mrb[0].mxu0
    %v2042 = vadd.f32 %v1813, %v2041
    %v2043 = vpop.f32.mrb[0].mxu0
    %v2044 = vpop.f32.mrb[0].mxu0
    %v2045 = vadd.f32 %v1813, %v2044
    %v2046 = vpop.f32.mrb[0].mxu0
    %2047 = vdwg.mxu0
    %2048 = vmatprep.subr.bf16.mxu0 0
    %2049 = vmatpush1.bf16.msra.mxu0 %v1959
    %2050 = vmatprep.subr.bf16.mxu0 0
    %2051 = vmatpush1.bf16.msra.mxu0 %v1960
    %2052 = vmatprep.subr.bf16.mxu0 0
    %2053 = vmatpush1.bf16.msra.mxu0 %v1961
    %2054 = vmatprep.subr.bf16.mxu0 0
    %2055 = vmatpush1.bf16.msra.mxu0 %v1962
    %2056 = vmatprep.subr.bf16.mxu0 0
    %2057 = vmatpush1.bf16.msra.mxu0 %v1963
    %2058 = vmatprep.subr.bf16.mxu0 0
    %2059 = vmatpush1.bf16.msra.mxu0 %v1964
    %2060 = vmatprep.subr.bf16.mxu0 0
    %2061 = vmatpush1.bf16.msra.mxu0 %v1965
    %2062 = vmatprep.subr.bf16.mxu0 0
    %2063 = vmatpush1.bf16.msra.mxu0 %v1966
    %2064 = vmatprep.subr.bf16.mxu0 0
    %2065 = vmatpush1.bf16.msra.mxu0 %v1967
    %2066 = vmatprep.subr.bf16.mxu0 0
    %2067 = vmatpush1.bf16.msra.mxu0 %v1968
    %2068 = vmatprep.subr.bf16.mxu0 0
    %2069 = vmatpush1.bf16.msra.mxu0 %v1969
    %2070 = vmatprep.subr.bf16.mxu0 0
    %2071 = vmatpush1.bf16.msra.mxu0 %v1970
    %2072 = vmatprep.subr.bf16.mxu0 0
    %2073 = vmatpush1.bf16.msra.mxu0 %v1971
    %2074 = vmatprep.subr.bf16.mxu0 0
    %2075 = vmatpush1.bf16.msra.mxu0 %v1972
    %2076 = vmatprep.subr.bf16.mxu0 0
    %2077 = vmatpush1.bf16.msra.mxu0 %v1973
    %2078 = vmatprep.subr.bf16.mxu0 0
    %2079 = vmatpush1.bf16.msra.mxu0 %v1974
    %2080 = vmatprep.mubr.bf16.mxu0 %v1743
    %2081 = vmatmul.mubr.bf16.gmra.mrb[0].mxu0 %v1742
    %v2082 = vpop.f32.mrb[0].mxu0
    %v2083 = vadd.f32 %v2042, %v2082
    %v2084 = vpop.f32.mrb[0].mxu0
    %v2085 = vpop.f32.mrb[0].mxu0
    %v2086 = vadd.f32 %v2045, %v2085
    %v2087 = vpop.f32.mrb[0].mxu0
    %2088 = vdwg.mxu0
    %v2089 = vmax.f32 %v2083, 0.0
    %v2090 = vmax.f32 %v2086, 0.0
    %v2091 = vpack.c.bf16 %v2090, %v2089
    %v2092 = vld [vmem:[#allocation10] sm:$0xf]
    %v2093 = vld [vmem:[#allocation10 + $0x4] sm:$0xf]
    %v2094 = vld [vmem:[#allocation10 + $0x8] sm:$0xf]
    %v2095 = vld [vmem:[#allocation10 + $0xc] sm:$0xf]
    %v2096 = vld [vmem:[#allocation10 + $0x10] sm:$0xf]
    %v2097 = vld [vmem:[#allocation10 + $0x14] sm:$0xf]
    %v2098 = vld [vmem:[#allocation10 + $0x18] sm:$0xf]
    %v2099 = vld [vmem:[#allocation10 + $0x1c] sm:$0xf]
    %v2100 = vld [vmem:[#allocation10 + $0x20] sm:$0xf]
    %v2101 = vld [vmem:[#allocation10 + $0x24] sm:$0xf]
    %v2102 = vld [vmem:[#allocation10 + $0x28] sm:$0xf]
    %v2103 = vld [vmem:[#allocation10 + $0x2c] sm:$0xf]
    %v2104 = vld [vmem:[#allocation10 + $0x30] sm:$0xf]
    %v2105 = vld [vmem:[#allocation10 + $0x34] sm:$0xf]
    %v2106 = vld [vmem:[#allocation10 + $0x38] sm:$0xf]
    %v2107 = vld [vmem:[#allocation10 + $0x3c] sm:$0xf]
    %v2108 = vld [vmem:[%s7] sm:$0x1]
    %v2110 = vlaneseq
    %v2111 = vshrl.u32 %v2110, 7
    %v2112 = vsub.s32 0, %v2111
    %v2113 = vrot.slane %v2108, %v2112
    %v2131 = vunpack.c.l.b16 %v2092
    %v2132 = vunpack.c.l.b16 %v2093
    %v2133 = vunpack.c.l.b16 %v2094
    %v2134 = vunpack.c.l.b16 %v2095
    %v2135 = vunpack.c.l.b16 %v2096
    %v2136 = vunpack.c.l.b16 %v2097
    %v2137 = vunpack.c.l.b16 %v2098
    %v2138 = vunpack.c.l.b16 %v2099
    %v2139 = vunpack.c.l.b16 %v2100
    %v2140 = vunpack.c.l.b16 %v2101
    %v2141 = vunpack.c.l.b16 %v2102
    %v2142 = vunpack.c.l.b16 %v2103
    %v2143 = vunpack.c.l.b16 %v2104
    %v2144 = vunpack.c.l.b16 %v2105
    %v2145 = vunpack.c.l.b16 %v2106
    %v2146 = vunpack.c.l.b16 %v2107
    %v2147 = vpack.c.b16 %v2132, %v2131
    %v2148 = vpack.c.b16 %v2134, %v2133
    %v2149 = vpack.c.b16 %v2136, %v2135
    %v2150 = vpack.c.b16 %v2138, %v2137
    %v2151 = vpack.c.b16 %v2140, %v2139
    %v2152 = vpack.c.b16 %v2142, %v2141
    %v2153 = vpack.c.b16 %v2144, %v2143
    %v2154 = vpack.c.b16 %v2146, %v2145
    %2163 = vmatprep.subr.bf16.mxu0 0
    %2164 = vmatpush1.bf16.msra.mxu0 %v2147
    %2165 = vmatprep.subr.bf16.mxu0 0
    %2166 = vmatpush1.bf16.msra.mxu0 %v2148
    %2167 = vmatprep.subr.bf16.mxu0 0
    %2168 = vmatpush1.bf16.msra.mxu0 %v2149
    %2169 = vmatprep.subr.bf16.mxu0 0
    %2170 = vmatpush1.bf16.msra.mxu0 %v2150
    %2171 = vmatprep.subr.bf16.mxu0 0
    %2172 = vmatpush1.bf16.msra.mxu0 %v2151
    %2173 = vmatprep.subr.bf16.mxu0 0
    %2174 = vmatpush1.bf16.msra.mxu0 %v2152
    %2175 = vmatprep.subr.bf16.mxu0 0
    %2176 = vmatpush1.bf16.msra.mxu0 %v2153
    %2177 = vmatprep.subr.bf16.mxu0 0
    %2178 = vmatpush1.bf16.msra.mxu0 %v2154
    %2179 = vmatprep.subr.bf16.mxu0 0
    %2180 = vmatpush1.bf16.msra.mxu0 0
    %2181 = vmatprep.subr.bf16.mxu0 0
    %2182 = vmatpush1.bf16.msra.mxu0 0
    %2183 = vmatprep.subr.bf16.mxu0 0
    %2184 = vmatpush1.bf16.msra.mxu0 0
    %2185 = vmatprep.subr.bf16.mxu0 0
    %2186 = vmatpush1.bf16.msra.mxu0 0
    %2187 = vmatprep.subr.bf16.mxu0 0
    %2188 = vmatpush1.bf16.msra.mxu0 0
    %2189 = vmatprep.subr.bf16.mxu0 0
    %2190 = vmatpush1.bf16.msra.mxu0 0
    %2191 = vmatprep.subr.bf16.mxu0 0
    %2192 = vmatpush1.bf16.msra.mxu0 0
    %2193 = vmatprep.subr.bf16.mxu0 0
    %2194 = vmatpush1.bf16.msra.mxu0 0
    %2195 = vmatprep.mubr.bf16.mxu0 0
    %2196 = vmatmul.mubr.bf16.gmra.mrb[0].mxu0 %v2091
    %v2197 = vpop.f32.mrb[0].mxu0
    %v2198 = vadd.f32 %v2113, %v2197
    %v2199 = vpop.f32.mrb[0].mxu0
    %v2200 = vpop.f32.mrb[0].mxu0
    %v2201 = vadd.f32 %v2113, %v2200
    %v2202 = vpop.f32.mrb[0].mxu0
    %2203 = vdwg.mxu0
    %v2204 = vmax.f32 %v2198, 0.0
    %v2205 = vmax.f32 %v2201, 0.0
    %v2206 = vpack.c.bf16 %v2205, %v2204
    %v2207 = vld [vmem:[#allocation11] sm:$0xf]
    %v2208 = vld [vmem:[#allocation11 + $0x4] sm:$0xf]
    %v2209 = vld [vmem:[#allocation11 + $0x8] sm:$0xf]
    %v2210 = vld [vmem:[#allocation11 + $0xc] sm:$0xf]
    %v2211 = vld [vmem:[#allocation11 + $0x10] sm:$0xf]
    %v2212 = vld [vmem:[#allocation11 + $0x14] sm:$0xf]
    %v2213 = vld [vmem:[#allocation11 + $0x18] sm:$0xf]
    %v2214 = vld [vmem:[#allocation11 + $0x1c] sm:$0xf]
    %v2215 = vld [vmem:[#allocation11 + $0x20] sm:$0xf]
    %v2216 = vld [vmem:[#allocation11 + $0x24] sm:$0xf]
    %v2217 = vld [vmem:[#allocation11 + $0x28] sm:$0xf]
    %v2218 = vld [vmem:[#allocation11 + $0x2c] sm:$0xf]
    %v2219 = vld [vmem:[#allocation11 + $0x30] sm:$0xf]
    %v2220 = vld [vmem:[#allocation11 + $0x34] sm:$0xf]
    %v2221 = vld [vmem:[#allocation11 + $0x38] sm:$0xf]
    %v2222 = vld [vmem:[#allocation11 + $0x3c] sm:$0xf]
    %v2223 = vld [vmem:[%s9] sm:$0x1]
    %v2225 = vlaneseq
    %v2226 = vshrl.u32 %v2225, 7
    %v2227 = vsub.s32 0, %v2226
    %v2228 = vrot.slane %v2223, %v2227
    %v2246 = vunpack.c.l.b16 %v2207
    %v2247 = vunpack.c.l.b16 %v2208
    %v2248 = vunpack.c.l.b16 %v2209
    %v2249 = vunpack.c.l.b16 %v2210
    %v2250 = vunpack.c.l.b16 %v2211
    %v2251 = vunpack.c.l.b16 %v2212
    %v2252 = vunpack.c.l.b16 %v2213
    %v2253 = vunpack.c.l.b16 %v2214
    %v2254 = vunpack.c.l.b16 %v2215
    %v2255 = vunpack.c.l.b16 %v2216
    %v2256 = vunpack.c.l.b16 %v2217
    %v2257 = vunpack.c.l.b16 %v2218
    %v2258 = vunpack.c.l.b16 %v2219
    %v2259 = vunpack.c.l.b16 %v2220
    %v2260 = vunpack.c.l.b16 %v2221
    %v2261 = vunpack.c.l.b16 %v2222
    %v2262 = vpack.c.b16 %v2247, %v2246
    %v2263 = vpack.c.b16 %v2249, %v2248
    %v2264 = vpack.c.b16 %v2251, %v2250
    %v2265 = vpack.c.b16 %v2253, %v2252
    %v2266 = vpack.c.b16 %v2255, %v2254
    %v2267 = vpack.c.b16 %v2257, %v2256
    %v2268 = vpack.c.b16 %v2259, %v2258
    %v2269 = vpack.c.b16 %v2261, %v2260
    %2278 = vmatprep.subr.bf16.mxu0 0
    %2279 = vmatpush1.bf16.msra.mxu0 %v2262
    %2280 = vmatprep.subr.bf16.mxu0 0
    %2281 = vmatpush1.bf16.msra.mxu0 %v2263
    %2282 = vmatprep.subr.bf16.mxu0 0
    %2283 = vmatpush1.bf16.msra.mxu0 %v2264
    %2284 = vmatprep.subr.bf16.mxu0 0
    %2285 = vmatpush1.bf16.msra.mxu0 %v2265
    %2286 = vmatprep.subr.bf16.mxu0 0
    %2287 = vmatpush1.bf16.msra.mxu0 %v2266
    %2288 = vmatprep.subr.bf16.mxu0 0
    %2289 = vmatpush1.bf16.msra.mxu0 %v2267
    %2290 = vmatprep.subr.bf16.mxu0 0
    %2291 = vmatpush1.bf16.msra.mxu0 %v2268
    %2292 = vmatprep.subr.bf16.mxu0 0
    %2293 = vmatpush1.bf16.msra.mxu0 %v2269
    %2294 = vmatprep.subr.bf16.mxu0 0
    %2295 = vmatpush1.bf16.msra.mxu0 0
    %2296 = vmatprep.subr.bf16.mxu0 0
    %2297 = vmatpush1.bf16.msra.mxu0 0
    %2298 = vmatprep.subr.bf16.mxu0 0
    %2299 = vmatpush1.bf16.msra.mxu0 0
    %2300 = vmatprep.subr.bf16.mxu0 0
    %2301 = vmatpush1.bf16.msra.mxu0 0
    %2302 = vmatprep.subr.bf16.mxu0 0
    %2303 = vmatpush1.bf16.msra.mxu0 0
    %2304 = vmatprep.subr.bf16.mxu0 0
    %2305 = vmatpush1.bf16.msra.mxu0 0
    %2306 = vmatprep.subr.bf16.mxu0 0
    %2307 = vmatpush1.bf16.msra.mxu0 0
    %2308 = vmatprep.subr.bf16.mxu0 0
    %2309 = vmatpush1.bf16.msra.mxu0 0
    %2310 = vmatprep.mubr.bf16.mxu0 0
    %2311 = vmatmul.mubr.bf16.gmra.mrb[0].mxu0 %v2206
    %v2312 = vpop.f32.mrb[0].mxu0
    %v2313 = vadd.f32 %v2228, %v2312
    %v2314 = vpop.f32.mrb[0].mxu0
    %v2315 = vpop.f32.mrb[0].mxu0
    %v2316 = vadd.f32 %v2228, %v2315
    %v2317 = vpop.f32.mrb[0].mxu0
    %2318 = vdwg.mxu0
    %2319 = vst [vmem:[#allocation13] sm:$0xff] %v2313
    %2320 = vst [vmem:[#allocation13 + $0x8] sm:$0xff] %v2316
    // Predicated region
    $region66: #{tpu_custom_call.1} parent=1 // pred_check
      _
    $region67: #{tpu_custom_call.1} parent=1 // pred_check_branch
      %2322 = sbr.rel (0) target = $region69
    $region68: #{tpu_custom_call.1} parent=1 // pred_region
      %s2324 = ssub.s32 256, 256
      %2325 = vsyncadd [#allocation4], %s2324
      %s2326 = sshll.u32 [#allocation13], 4
      %s2327 = int_to_ptr.vmem [resolvable:$true] %s2326
      %2332 = dma.vmem_to_hbm [thread:$0]  %s2327, 256, %s10, [#allocation4], 128, 128, 8
    $region69: #{tpu_custom_call.1} parent=1 // pred_fallthru
      _
    // Predicated region
    $region70: #{tpu_custom_call.1} parent=1 // pred_check
      _
    $region71: #{tpu_custom_call.1} parent=1 // pred_check_branch
      %2334 = sbr.rel (0) target = $region73
    $region72: #{tpu_custom_call.1} parent=1 // pred_region
      %2335 = dma.done [#allocation4], 256
    $region73: #{tpu_custom_call.1} parent=1 // pred_fallthru
      _
    %2336 = vsyncpa [#allocation3], 1
    %2337 = vsyncpa [#allocation6], 1
    %2338 = vsyncpa [#allocation9], 1
    %2339 = vsyncpa [#allocation12], 1
    %2340 = vsyncpa [#allocation4], 1

</llo_original>
